<compile_context>
chip_gen: v5e
topology: v5e:2x2
jax: 0.10.0
libtpu: 0.0.40
codegen_flags: <defaults>
</compile_context>

<pallas_src>
import jax
import jax.numpy as jnp
from jax.experimental import pallas as pl
from jax.experimental.pallas import tpu as pltpu


# ----------------------------------------------------------------------------
# Pallas kernel (single grid step).  Computes, for every batch element b and
# output channel o:
#     out[b, o, p] = sum_c  u[b, c, p] * w[c, o, p]  + bias[o, p]
# where p = fy*fold + fx (im = fold*fold = 256, the LANE axis) and c indexes
# the col = C_in*k*k = 36 reduction axis.  The reduction is an unrolled
# broadcast-MAC over c onto a lane-dense (out_ch, im) register accumulator,
# so the output is produced packed and stored with one unmasked block store.
# ----------------------------------------------------------------------------
def _local_linear_kernel(u_ref, w_ref, b_ref, o_ref):
    # u_ref: (B, col, im)       scrambled patch slab, im lane-dense
    # w_ref: (col, out_ch, im)  unshared weights, pre-laid-out at init
    # b_ref: (out_ch, im)       bias, lane-dense
    # o_ref: (B, out_ch, im)    output, lane-dense
    B = u_ref.shape[0]
    col = u_ref.shape[1]

    for bi in range(B):                        # static unroll, B = 2
        acc = b_ref[...]                       # (out_ch, im): start from bias
        for c in range(col):                   # static unroll, col = 36
            u_row = u_ref[bi, c, :]            # (im,) — one patch-row
            # broadcast u_row over the out_ch sublanes, MAC into accumulator
            acc = acc + u_row * w_ref[c]       # (out_ch, im) full-lane VPU
        o_ref[bi] = acc                        # ONE unmasked (8, 256) store


def local_linear_pallas(u_k, w_k, b_k):
    # u_k: (B, col, im)   w_k: (col, out_ch, im)   b_k: (out_ch, im)
    B, col, im = u_k.shape
    out_ch = w_k.shape[1]
    return pl.pallas_call(
        _local_linear_kernel,
        out_shape=jax.ShapeDtypeStruct((B, out_ch, im), jnp.float32),
        grid_spec=pltpu.PrefetchScalarGridSpec(
            num_scalar_prefetch=0,
            grid=(1,),                                   # single step: no per-step overhead
            in_specs=[
                pl.BlockSpec((B, col, im), lambda i: (0, 0, 0)),
                pl.BlockSpec((col, out_ch, im), lambda i: (0, 0, 0)),
                pl.BlockSpec((out_ch, im), lambda i: (0, 0)),
            ],
            out_specs=pl.BlockSpec((B, out_ch, im), lambda i: (0, 0, 0)),
        ),
        compiler_params=pltpu.CompilerParams(
            dimension_semantics=("arbitrary",)),
    )(u_k, w_k, b_k)


# ----------------------------------------------------------------------------
# One-time parameter preprocessing (hoisted out of the per-call forward).
# ----------------------------------------------------------------------------
def prepare_local_linear_params(weight, bias):
    # weight: (out_ch, fold, fold, C, k, k)   bias: (out_ch, fold, fold)
    out_ch, fold = weight.shape[0], weight.shape[1]
    im = fold * fold
    col = weight.shape[3] * weight.shape[4] * weight.shape[5]
    # Natural raw view (out_ch, im, col) -> kernel layout (col, out_ch, im):
    # done once at init; the forward never touches the original layout again.
    w_k = jnp.transpose(weight.reshape(out_ch, im, col), (2, 0, 1)).astype(jnp.float32)
    b_k = bias.reshape(out_ch, im).astype(jnp.float32)
    return w_k, b_k


# ----------------------------------------------------------------------------
# Glue: torch.nn.functional.unfold equivalent (NCHW, column order (c, ky, kx))
# ----------------------------------------------------------------------------
def unfold_nchw(x, k, stride, padding, fold):
    B, C, H, W = x.shape
    xp = jnp.pad(x, ((0, 0), (0, 0), (padding, padding), (padding, padding)))
    cols = []
    for ky in range(k):
        for kx in range(k):
            stop_y = ky + (fold - 1) * stride + 1
            stop_x = kx + (fold - 1) * stride + 1
            cols.append(xp[:, :, ky:stop_y:stride, kx:stop_x:stride])  # (B,C,fold,fold)
    # inner ordering (ky, kx) under channel c matches torch unfold: (c*k*k + ky*k + kx)
    patches = jnp.stack(cols, axis=2)                  # (B, C, k*k, fold, fold)
    return patches.reshape(B, C * k * k, fold * fold)  # (B, col, im)


def local_linear_forward(x, w_k, b_k, *, kernel_size, stride, padding, fold):
    B, C, H, W = x.shape
    out_ch = w_k.shape[1]
    col = C * kernel_size * kernel_size
    im = fold * fold

    unf = unfold_nchw(x, kernel_size, stride, padding, fold)   # (B, col, im)
    # Bug-preserving scrambled raw view of the contiguous unfold output
    # ((B,col,im) -> (B,im,col) reinterpretation, a free bitcast reshape),
    # then lane-dense (im on lanes) layout for the kernel.  Under jit the
    # pad/unfold/reshape/transpose fuse into one small XLA fusion.
    u_k = jnp.transpose(unf.reshape(B, im, col), (0, 2, 1)).astype(jnp.float32)

    out = local_linear_pallas(u_k, w_k, b_k)                   # (B, out_ch, im)
    return out.reshape(B, out_ch, fold, fold)


local_linear_forward_jit = jax.jit(
    local_linear_forward,
    static_argnames=("kernel_size", "stride", "padding", "fold"))


if __name__ == "__main__":
    # Module hyper-parameters (small, consistent with the torch module).
    in_channels = 4
    out_channels = 8
    kernel_size = 3
    stride = 1
    padding = 1
    image_size = 16
    fold = (image_size + 2 * padding - kernel_size) // stride + 1    # 16
    B = 2

    key = jax.random.PRNGKey(0)
    kx, kw, kb = jax.random.split(key, 3)
    x = jax.random.normal(kx, (B, in_channels, image_size, image_size), jnp.float32)
    weight = jax.random.normal(
        kw, (out_channels, fold, fold, in_channels, kernel_size, kernel_size), jnp.float32)
    bias = jax.random.normal(kb, (out_channels, fold, fold), jnp.float32)

    # One-time parameter layout prep (hoisted out of the per-call forward).
    w_k, b_k = prepare_local_linear_params(weight, bias)

    out = local_linear_forward_jit(
        x, w_k, b_k,
        kernel_size=kernel_size, stride=stride, padding=padding, fold=fold)
    out = jax.block_until_ready(out)

    # Pure-JAX reference of the exact same (scrambled-view) math.
    col = in_channels * kernel_size * kernel_size
    unf = unfold_nchw(x, kernel_size, stride, padding, fold)
    u2 = unf.reshape(B, fold * fold, col).reshape(B, fold, fold, col)
    w2 = weight.reshape(out_channels, fold, fold, col)
    ref = jnp.einsum("bfgc,ofgc->bofg", u2, w2) + bias[None]

    assert out.shape == (B, out_channels, fold, fold)
    assert jnp.allclose(out, ref, atol=1e-4, rtol=1e-4)
    print("KERNEL_OK")
</pallas_src>

<mosaic_0001>
module attributes {stable_mosaic.version = 11 : i64} {
  func.func @_local_linear_kernel(%arg0: i32, %arg1: memref<2x36x256xf32, #tpu.memory_space<vmem>>, %arg2: memref<36x8x256xf32, #tpu.memory_space<vmem>>, %arg3: memref<8x256xf32, #tpu.memory_space<vmem>>, %arg4: memref<2x8x256xf32, #tpu.memory_space<vmem>>) attributes {dimension_semantics = [#tpu.dimension_semantics<arbitrary>], iteration_bounds = array<i64: 1>, scalar_prefetch = 0 : i64, scratch_operands = 0 : i64, tpu.core_type = #tpu.core_type<tc>, window_params = [{pipeline_mode = #tpu.pipeline_mode<synchronous>, transform_indices = @transform_0, window_bounds = array<i64: 2, 36, 256>}, {pipeline_mode = #tpu.pipeline_mode<synchronous>, transform_indices = @transform_1, window_bounds = array<i64: 36, 8, 256>}, {pipeline_mode = #tpu.pipeline_mode<synchronous>, transform_indices = @transform_2, window_bounds = array<i64: 8, 256>}, {pipeline_mode = #tpu.pipeline_mode<synchronous>, transform_indices = @transform_3, window_bounds = array<i64: 2, 8, 256>}]} {
    %c0 = arith.constant 0 : index
    %c0_0 = arith.constant 0 : index
    %0 = vector.load %arg3[%c0, %c0_0] : memref<8x256xf32, #tpu.memory_space<vmem>>, vector<8x256xf32>
    %c0_1 = arith.constant 0 : index
    %c0_2 = arith.constant 0 : index
    %c0_3 = arith.constant 0 : index
    %1 = vector.load %arg1[%c0_1, %c0_2, %c0_3] : memref<2x36x256xf32, #tpu.memory_space<vmem>>, vector<1x1x256xf32>
    %2 = vector.shape_cast %1 : vector<1x1x256xf32> to vector<256xf32>
    %c0_4 = arith.constant 0 : index
    %c0_5 = arith.constant 0 : index
    %c0_6 = arith.constant 0 : index
    %3 = vector.load %arg2[%c0_4, %c0_5, %c0_6] : memref<36x8x256xf32, #tpu.memory_space<vmem>>, vector<1x8x256xf32>
    %4 = vector.shape_cast %3 : vector<1x8x256xf32> to vector<8x256xf32>
    %5 = vector.shape_cast %2 : vector<256xf32> to vector<1x256xf32>
    %6 = vector.broadcast %5 : vector<1x256xf32> to vector<8x256xf32>
    %7 = arith.mulf %6, %4 : vector<8x256xf32>
    %8 = arith.addf %0, %7 : vector<8x256xf32>
    %c0_7 = arith.constant 0 : index
    %c1 = arith.constant 1 : index
    %c0_8 = arith.constant 0 : index
    %9 = vector.load %arg1[%c0_7, %c1, %c0_8] : memref<2x36x256xf32, #tpu.memory_space<vmem>>, vector<1x1x256xf32>
    %10 = vector.shape_cast %9 : vector<1x1x256xf32> to vector<256xf32>
    %c1_9 = arith.constant 1 : index
    %c0_10 = arith.constant 0 : index
    %c0_11 = arith.constant 0 : index
    %11 = vector.load %arg2[%c1_9, %c0_10, %c0_11] : memref<36x8x256xf32, #tpu.memory_space<vmem>>, vector<1x8x256xf32>
    %12 = vector.shape_cast %11 : vector<1x8x256xf32> to vector<8x256xf32>
    %13 = vector.shape_cast %10 : vector<256xf32> to vector<1x256xf32>
    %14 = vector.broadcast %13 : vector<1x256xf32> to vector<8x256xf32>
    %15 = arith.mulf %14, %12 : vector<8x256xf32>
    %16 = arith.addf %8, %15 : vector<8x256xf32>
    %c0_12 = arith.constant 0 : index
    %c2 = arith.constant 2 : index
    %c0_13 = arith.constant 0 : index
    %17 = vector.load %arg1[%c0_12, %c2, %c0_13] : memref<2x36x256xf32, #tpu.memory_space<vmem>>, vector<1x1x256xf32>
    %18 = vector.shape_cast %17 : vector<1x1x256xf32> to vector<256xf32>
    %c2_14 = arith.constant 2 : index
    %c0_15 = arith.constant 0 : index
    %c0_16 = arith.constant 0 : index
    %19 = vector.load %arg2[%c2_14, %c0_15, %c0_16] : memref<36x8x256xf32, #tpu.memory_space<vmem>>, vector<1x8x256xf32>
    %20 = vector.shape_cast %19 : vector<1x8x256xf32> to vector<8x256xf32>
    %21 = vector.shape_cast %18 : vector<256xf32> to vector<1x256xf32>
    %22 = vector.broadcast %21 : vector<1x256xf32> to vector<8x256xf32>
    %23 = arith.mulf %22, %20 : vector<8x256xf32>
    %24 = arith.addf %16, %23 : vector<8x256xf32>
    %c0_17 = arith.constant 0 : index
    %c3 = arith.constant 3 : index
    %c0_18 = arith.constant 0 : index
    %25 = vector.load %arg1[%c0_17, %c3, %c0_18] : memref<2x36x256xf32, #tpu.memory_space<vmem>>, vector<1x1x256xf32>
    %26 = vector.shape_cast %25 : vector<1x1x256xf32> to vector<256xf32>
    %c3_19 = arith.constant 3 : index
    %c0_20 = arith.constant 0 : index
    %c0_21 = arith.constant 0 : index
    %27 = vector.load %arg2[%c3_19, %c0_20, %c0_21] : memref<36x8x256xf32, #tpu.memory_space<vmem>>, vector<1x8x256xf32>
    %28 = vector.shape_cast %27 : vector<1x8x256xf32> to vector<8x256xf32>
    %29 = vector.shape_cast %26 : vector<256xf32> to vector<1x256xf32>
    %30 = vector.broadcast %29 : vector<1x256xf32> to vector<8x256xf32>
    %31 = arith.mulf %30, %28 : vector<8x256xf32>
    %32 = arith.addf %24, %31 : vector<8x256xf32>
    %c0_22 = arith.constant 0 : index
    %c4 = arith.constant 4 : index
    %c0_23 = arith.constant 0 : index
    %33 = vector.load %arg1[%c0_22, %c4, %c0_23] : memref<2x36x256xf32, #tpu.memory_space<vmem>>, vector<1x1x256xf32>
    %34 = vector.shape_cast %33 : vector<1x1x256xf32> to vector<256xf32>
    %c4_24 = arith.constant 4 : index
    %c0_25 = arith.constant 0 : index
    %c0_26 = arith.constant 0 : index
    %35 = vector.load %arg2[%c4_24, %c0_25, %c0_26] : memref<36x8x256xf32, #tpu.memory_space<vmem>>, vector<1x8x256xf32>
    %36 = vector.shape_cast %35 : vector<1x8x256xf32> to vector<8x256xf32>
    %37 = vector.shape_cast %34 : vector<256xf32> to vector<1x256xf32>
    %38 = vector.broadcast %37 : vector<1x256xf32> to vector<8x256xf32>
    %39 = arith.mulf %38, %36 : vector<8x256xf32>
    %40 = arith.addf %32, %39 : vector<8x256xf32>
    %c0_27 = arith.constant 0 : index
    %c5 = arith.constant 5 : index
    %c0_28 = arith.constant 0 : index
    %41 = vector.load %arg1[%c0_27, %c5, %c0_28] : memref<2x36x256xf32, #tpu.memory_space<vmem>>, vector<1x1x256xf32>
    %42 = vector.shape_cast %41 : vector<1x1x256xf32> to vector<256xf32>
    %c5_29 = arith.constant 5 : index
    %c0_30 = arith.constant 0 : index
    %c0_31 = arith.constant 0 : index
    %43 = vector.load %arg2[%c5_29, %c0_30, %c0_31] : memref<36x8x256xf32, #tpu.memory_space<vmem>>, vector<1x8x256xf32>
    %44 = vector.shape_cast %43 : vector<1x8x256xf32> to vector<8x256xf32>
    %45 = vector.shape_cast %42 : vector<256xf32> to vector<1x256xf32>
    %46 = vector.broadcast %45 : vector<1x256xf32> to vector<8x256xf32>
    %47 = arith.mulf %46, %44 : vector<8x256xf32>
    %48 = arith.addf %40, %47 : vector<8x256xf32>
    %c0_32 = arith.constant 0 : index
    %c6 = arith.constant 6 : index
    %c0_33 = arith.constant 0 : index
    %49 = vector.load %arg1[%c0_32, %c6, %c0_33] : memref<2x36x256xf32, #tpu.memory_space<vmem>>, vector<1x1x256xf32>
    %50 = vector.shape_cast %49 : vector<1x1x256xf32> to vector<256xf32>
    %c6_34 = arith.constant 6 : index
    %c0_35 = arith.constant 0 : index
    %c0_36 = arith.constant 0 : index
    %51 = vector.load %arg2[%c6_34, %c0_35, %c0_36] : memref<36x8x256xf32, #tpu.memory_space<vmem>>, vector<1x8x256xf32>
    %52 = vector.shape_cast %51 : vector<1x8x256xf32> to vector<8x256xf32>
    %53 = vector.shape_cast %50 : vector<256xf32> to vector<1x256xf32>
    %54 = vector.broadcast %53 : vector<1x256xf32> to vector<8x256xf32>
    %55 = arith.mulf %54, %52 : vector<8x256xf32>
    %56 = arith.addf %48, %55 : vector<8x256xf32>
    %c0_37 = arith.constant 0 : index
    %c7 = arith.constant 7 : index
    %c0_38 = arith.constant 0 : index
    %57 = vector.load %arg1[%c0_37, %c7, %c0_38] : memref<2x36x256xf32, #tpu.memory_space<vmem>>, vector<1x1x256xf32>
    %58 = vector.shape_cast %57 : vector<1x1x256xf32> to vector<256xf32>
    %c7_39 = arith.constant 7 : index
    %c0_40 = arith.constant 0 : index
    %c0_41 = arith.constant 0 : index
    %59 = vector.load %arg2[%c7_39, %c0_40, %c0_41] : memref<36x8x256xf32, #tpu.memory_space<vmem>>, vector<1x8x256xf32>
    %60 = vector.shape_cast %59 : vector<1x8x256xf32> to vector<8x256xf32>
    %61 = vector.shape_cast %58 : vector<256xf32> to vector<1x256xf32>
    %62 = vector.broadcast %61 : vector<1x256xf32> to vector<8x256xf32>
    %63 = arith.mulf %62, %60 : vector<8x256xf32>
    %64 = arith.addf %56, %63 : vector<8x256xf32>
    %c0_42 = arith.constant 0 : index
    %c8 = arith.constant 8 : index
    %c0_43 = arith.constant 0 : index
    %65 = vector.load %arg1[%c0_42, %c8, %c0_43] : memref<2x36x256xf32, #tpu.memory_space<vmem>>, vector<1x1x256xf32>
    %66 = vector.shape_cast %65 : vector<1x1x256xf32> to vector<256xf32>
    %c8_44 = arith.constant 8 : index
    %c0_45 = arith.constant 0 : index
    %c0_46 = arith.constant 0 : index
    %67 = vector.load %arg2[%c8_44, %c0_45, %c0_46] : memref<36x8x256xf32, #tpu.memory_space<vmem>>, vector<1x8x256xf32>
    %68 = vector.shape_cast %67 : vector<1x8x256xf32> to vector<8x256xf32>
    %69 = vector.shape_cast %66 : vector<256xf32> to vector<1x256xf32>
    %70 = vector.broadcast %69 : vector<1x256xf32> to vector<8x256xf32>
    %71 = arith.mulf %70, %68 : vector<8x256xf32>
    %72 = arith.addf %64, %71 : vector<8x256xf32>
    %c0_47 = arith.constant 0 : index
    %c9 = arith.constant 9 : index
    %c0_48 = arith.constant 0 : index
    %73 = vector.load %arg1[%c0_47, %c9, %c0_48] : memref<2x36x256xf32, #tpu.memory_space<vmem>>, vector<1x1x256xf32>
    %74 = vector.shape_cast %73 : vector<1x1x256xf32> to vector<256xf32>
    %c9_49 = arith.constant 9 : index
    %c0_50 = arith.constant 0 : index
    %c0_51 = arith.constant 0 : index
    %75 = vector.load %arg2[%c9_49, %c0_50, %c0_51] : memref<36x8x256xf32, #tpu.memory_space<vmem>>, vector<1x8x256xf32>
    %76 = vector.shape_cast %75 : vector<1x8x256xf32> to vector<8x256xf32>
    %77 = vector.shape_cast %74 : vector<256xf32> to vector<1x256xf32>
    %78 = vector.broadcast %77 : vector<1x256xf32> to vector<8x256xf32>
    %79 = arith.mulf %78, %76 : vector<8x256xf32>
    %80 = arith.addf %72, %79 : vector<8x256xf32>
    %c0_52 = arith.constant 0 : index
    %c10 = arith.constant 10 : index
    %c0_53 = arith.constant 0 : index
    %81 = vector.load %arg1[%c0_52, %c10, %c0_53] : memref<2x36x256xf32, #tpu.memory_space<vmem>>, vector<1x1x256xf32>
    %82 = vector.shape_cast %81 : vector<1x1x256xf32> to vector<256xf32>
    %c10_54 = arith.constant 10 : index
    %c0_55 = arith.constant 0 : index
    %c0_56 = arith.constant 0 : index
    %83 = vector.load %arg2[%c10_54, %c0_55, %c0_56] : memref<36x8x256xf32, #tpu.memory_space<vmem>>, vector<1x8x256xf32>
    %84 = vector.shape_cast %83 : vector<1x8x256xf32> to vector<8x256xf32>
    %85 = vector.shape_cast %82 : vector<256xf32> to vector<1x256xf32>
    %86 = vector.broadcast %85 : vector<1x256xf32> to vector<8x256xf32>
    %87 = arith.mulf %86, %84 : vector<8x256xf32>
    %88 = arith.addf %80, %87 : vector<8x256xf32>
    %c0_57 = arith.constant 0 : index
    %c11 = arith.constant 11 : index
    %c0_58 = arith.constant 0 : index
    %89 = vector.load %arg1[%c0_57, %c11, %c0_58] : memref<2x36x256xf32, #tpu.memory_space<vmem>>, vector<1x1x256xf32>
    %90 = vector.shape_cast %89 : vector<1x1x256xf32> to vector<256xf32>
    %c11_59 = arith.constant 11 : index
    %c0_60 = arith.constant 0 : index
    %c0_61 = arith.constant 0 : index
    %91 = vector.load %arg2[%c11_59, %c0_60, %c0_61] : memref<36x8x256xf32, #tpu.memory_space<vmem>>, vector<1x8x256xf32>
    %92 = vector.shape_cast %91 : vector<1x8x256xf32> to vector<8x256xf32>
    %93 = vector.shape_cast %90 : vector<256xf32> to vector<1x256xf32>
    %94 = vector.broadcast %93 : vector<1x256xf32> to vector<8x256xf32>
    %95 = arith.mulf %94, %92 : vector<8x256xf32>
    %96 = arith.addf %88, %95 : vector<8x256xf32>
    %c0_62 = arith.constant 0 : index
    %c12 = arith.constant 12 : index
    %c0_63 = arith.constant 0 : index
    %97 = vector.load %arg1[%c0_62, %c12, %c0_63] : memref<2x36x256xf32, #tpu.memory_space<vmem>>, vector<1x1x256xf32>
    %98 = vector.shape_cast %97 : vector<1x1x256xf32> to vector<256xf32>
    %c12_64 = arith.constant 12 : index
    %c0_65 = arith.constant 0 : index
    %c0_66 = arith.constant 0 : index
    %99 = vector.load %arg2[%c12_64, %c0_65, %c0_66] : memref<36x8x256xf32, #tpu.memory_space<vmem>>, vector<1x8x256xf32>
    %100 = vector.shape_cast %99 : vector<1x8x256xf32> to vector<8x256xf32>
    %101 = vector.shape_cast %98 : vector<256xf32> to vector<1x256xf32>
    %102 = vector.broadcast %101 : vector<1x256xf32> to vector<8x256xf32>
    %103 = arith.mulf %102, %100 : vector<8x256xf32>
    %104 = arith.addf %96, %103 : vector<8x256xf32>
    %c0_67 = arith.constant 0 : index
    %c13 = arith.constant 13 : index
    %c0_68 = arith.constant 0 : index
    %105 = vector.load %arg1[%c0_67, %c13, %c0_68] : memref<2x36x256xf32, #tpu.memory_space<vmem>>, vector<1x1x256xf32>
    %106 = vector.shape_cast %105 : vector<1x1x256xf32> to vector<256xf32>
    %c13_69 = arith.constant 13 : index
    %c0_70 = arith.constant 0 : index
    %c0_71 = arith.constant 0 : index
    %107 = vector.load %arg2[%c13_69, %c0_70, %c0_71] : memref<36x8x256xf32, #tpu.memory_space<vmem>>, vector<1x8x256xf32>
    %108 = vector.shape_cast %107 : vector<1x8x256xf32> to vector<8x256xf32>
    %109 = vector.shape_cast %106 : vector<256xf32> to vector<1x256xf32>
    %110 = vector.broadcast %109 : vector<1x256xf32> to vector<8x256xf32>
    %111 = arith.mulf %110, %108 : vector<8x256xf32>
    %112 = arith.addf %104, %111 : vector<8x256xf32>
    %c0_72 = arith.constant 0 : index
    %c14 = arith.constant 14 : index
    %c0_73 = arith.constant 0 : index
    %113 = vector.load %arg1[%c0_72, %c14, %c0_73] : memref<2x36x256xf32, #tpu.memory_space<vmem>>, vector<1x1x256xf32>
    %114 = vector.shape_cast %113 : vector<1x1x256xf32> to vector<256xf32>
    %c14_74 = arith.constant 14 : index
    %c0_75 = arith.constant 0 : index
    %c0_76 = arith.constant 0 : index
    %115 = vector.load %arg2[%c14_74, %c0_75, %c0_76] : memref<36x8x256xf32, #tpu.memory_space<vmem>>, vector<1x8x256xf32>
    %116 = vector.shape_cast %115 : vector<1x8x256xf32> to vector<8x256xf32>
    %117 = vector.shape_cast %114 : vector<256xf32> to vector<1x256xf32>
    %118 = vector.broadcast %117 : vector<1x256xf32> to vector<8x256xf32>
    %119 = arith.mulf %118, %116 : vector<8x256xf32>
    %120 = arith.addf %112, %119 : vector<8x256xf32>
    %c0_77 = arith.constant 0 : index
    %c15 = arith.constant 15 : index
    %c0_78 = arith.constant 0 : index
    %121 = vector.load %arg1[%c0_77, %c15, %c0_78] : memref<2x36x256xf32, #tpu.memory_space<vmem>>, vector<1x1x256xf32>
    %122 = vector.shape_cast %121 : vector<1x1x256xf32> to vector<256xf32>
    %c15_79 = arith.constant 15 : index
    %c0_80 = arith.constant 0 : index
    %c0_81 = arith.constant 0 : index
    %123 = vector.load %arg2[%c15_79, %c0_80, %c0_81] : memref<36x8x256xf32, #tpu.memory_space<vmem>>, vector<1x8x256xf32>
    %124 = vector.shape_cast %123 : vector<1x8x256xf32> to vector<8x256xf32>
    %125 = vector.shape_cast %122 : vector<256xf32> to vector<1x256xf32>
    %126 = vector.broadcast %125 : vector<1x256xf32> to vector<8x256xf32>
    %127 = arith.mulf %126, %124 : vector<8x256xf32>
    %128 = arith.addf %120, %127 : vector<8x256xf32>
    %c0_82 = arith.constant 0 : index
    %c16 = arith.constant 16 : index
    %c0_83 = arith.constant 0 : index
    %129 = vector.load %arg1[%c0_82, %c16, %c0_83] : memref<2x36x256xf32, #tpu.memory_space<vmem>>, vector<1x1x256xf32>
    %130 = vector.shape_cast %129 : vector<1x1x256xf32> to vector<256xf32>
    %c16_84 = arith.constant 16 : index
    %c0_85 = arith.constant 0 : index
    %c0_86 = arith.constant 0 : index
    %131 = vector.load %arg2[%c16_84, %c0_85, %c0_86] : memref<36x8x256xf32, #tpu.memory_space<vmem>>, vector<1x8x256xf32>
    %132 = vector.shape_cast %131 : vector<1x8x256xf32> to vector<8x256xf32>
    %133 = vector.shape_cast %130 : vector<256xf32> to vector<1x256xf32>
    %134 = vector.broadcast %133 : vector<1x256xf32> to vector<8x256xf32>
    %135 = arith.mulf %134, %132 : vector<8x256xf32>
    %136 = arith.addf %128, %135 : vector<8x256xf32>
    %c0_87 = arith.constant 0 : index
    %c17 = arith.constant 17 : index
    %c0_88 = arith.constant 0 : index
    %137 = vector.load %arg1[%c0_87, %c17, %c0_88] : memref<2x36x256xf32, #tpu.memory_space<vmem>>, vector<1x1x256xf32>
    %138 = vector.shape_cast %137 : vector<1x1x256xf32> to vector<256xf32>
    %c17_89 = arith.constant 17 : index
    %c0_90 = arith.constant 0 : index
    %c0_91 = arith.constant 0 : index
    %139 = vector.load %arg2[%c17_89, %c0_90, %c0_91] : memref<36x8x256xf32, #tpu.memory_space<vmem>>, vector<1x8x256xf32>
    %140 = vector.shape_cast %139 : vector<1x8x256xf32> to vector<8x256xf32>
    %141 = vector.shape_cast %138 : vector<256xf32> to vector<1x256xf32>
    %142 = vector.broadcast %141 : vector<1x256xf32> to vector<8x256xf32>
    %143 = arith.mulf %142, %140 : vector<8x256xf32>
    %144 = arith.addf %136, %143 : vector<8x256xf32>
    %c0_92 = arith.constant 0 : index
    %c18 = arith.constant 18 : index
    %c0_93 = arith.constant 0 : index
    %145 = vector.load %arg1[%c0_92, %c18, %c0_93] : memref<2x36x256xf32, #tpu.memory_space<vmem>>, vector<1x1x256xf32>
    %146 = vector.shape_cast %145 : vector<1x1x256xf32> to vector<256xf32>
    %c18_94 = arith.constant 18 : index
    %c0_95 = arith.constant 0 : index
    %c0_96 = arith.constant 0 : index
    %147 = vector.load %arg2[%c18_94, %c0_95, %c0_96] : memref<36x8x256xf32, #tpu.memory_space<vmem>>, vector<1x8x256xf32>
    %148 = vector.shape_cast %147 : vector<1x8x256xf32> to vector<8x256xf32>
    %149 = vector.shape_cast %146 : vector<256xf32> to vector<1x256xf32>
    %150 = vector.broadcast %149 : vector<1x256xf32> to vector<8x256xf32>
    %151 = arith.mulf %150, %148 : vector<8x256xf32>
    %152 = arith.addf %144, %151 : vector<8x256xf32>
    %c0_97 = arith.constant 0 : index
    %c19 = arith.constant 19 : index
    %c0_98 = arith.constant 0 : index
    %153 = vector.load %arg1[%c0_97, %c19, %c0_98] : memref<2x36x256xf32, #tpu.memory_space<vmem>>, vector<1x1x256xf32>
    %154 = vector.shape_cast %153 : vector<1x1x256xf32> to vector<256xf32>
    %c19_99 = arith.constant 19 : index
    %c0_100 = arith.constant 0 : index
    %c0_101 = arith.constant 0 : index
    %155 = vector.load %arg2[%c19_99, %c0_100, %c0_101] : memref<36x8x256xf32, #tpu.memory_space<vmem>>, vector<1x8x256xf32>
    %156 = vector.shape_cast %155 : vector<1x8x256xf32> to vector<8x256xf32>
    %157 = vector.shape_cast %154 : vector<256xf32> to vector<1x256xf32>
    %158 = vector.broadcast %157 : vector<1x256xf32> to vector<8x256xf32>
    %159 = arith.mulf %158, %156 : vector<8x256xf32>
    %160 = arith.addf %152, %159 : vector<8x256xf32>
    %c0_102 = arith.constant 0 : index
    %c20 = arith.constant 20 : index
    %c0_103 = arith.constant 0 : index
    %161 = vector.load %arg1[%c0_102, %c20, %c0_103] : memref<2x36x256xf32, #tpu.memory_space<vmem>>, vector<1x1x256xf32>
    %162 = vector.shape_cast %161 : vector<1x1x256xf32> to vector<256xf32>
    %c20_104 = arith.constant 20 : index
    %c0_105 = arith.constant 0 : index
    %c0_106 = arith.constant 0 : index
    %163 = vector.load %arg2[%c20_104, %c0_105, %c0_106] : memref<36x8x256xf32, #tpu.memory_space<vmem>>, vector<1x8x256xf32>
    %164 = vector.shape_cast %163 : vector<1x8x256xf32> to vector<8x256xf32>
    %165 = vector.shape_cast %162 : vector<256xf32> to vector<1x256xf32>
    %166 = vector.broadcast %165 : vector<1x256xf32> to vector<8x256xf32>
    %167 = arith.mulf %166, %164 : vector<8x256xf32>
    %168 = arith.addf %160, %167 : vector<8x256xf32>
    %c0_107 = arith.constant 0 : index
    %c21 = arith.constant 21 : index
    %c0_108 = arith.constant 0 : index
    %169 = vector.load %arg1[%c0_107, %c21, %c0_108] : memref<2x36x256xf32, #tpu.memory_space<vmem>>, vector<1x1x256xf32>
    %170 = vector.shape_cast %169 : vector<1x1x256xf32> to vector<256xf32>
    %c21_109 = arith.constant 21 : index
    %c0_110 = arith.constant 0 : index
    %c0_111 = arith.constant 0 : index
    %171 = vector.load %arg2[%c21_109, %c0_110, %c0_111] : memref<36x8x256xf32, #tpu.memory_space<vmem>>, vector<1x8x256xf32>
    %172 = vector.shape_cast %171 : vector<1x8x256xf32> to vector<8x256xf32>
    %173 = vector.shape_cast %170 : vector<256xf32> to vector<1x256xf32>
    %174 = vector.broadcast %173 : vector<1x256xf32> to vector<8x256xf32>
    %175 = arith.mulf %174, %172 : vector<8x256xf32>
    %176 = arith.addf %168, %175 : vector<8x256xf32>
    %c0_112 = arith.constant 0 : index
    %c22 = arith.constant 22 : index
    %c0_113 = arith.constant 0 : index
    %177 = vector.load %arg1[%c0_112, %c22, %c0_113] : memref<2x36x256xf32, #tpu.memory_space<vmem>>, vector<1x1x256xf32>
    %178 = vector.shape_cast %177 : vector<1x1x256xf32> to vector<256xf32>
    %c22_114 = arith.constant 22 : index
    %c0_115 = arith.constant 0 : index
    %c0_116 = arith.constant 0 : index
    %179 = vector.load %arg2[%c22_114, %c0_115, %c0_116] : memref<36x8x256xf32, #tpu.memory_space<vmem>>, vector<1x8x256xf32>
    %180 = vector.shape_cast %179 : vector<1x8x256xf32> to vector<8x256xf32>
    %181 = vector.shape_cast %178 : vector<256xf32> to vector<1x256xf32>
    %182 = vector.broadcast %181 : vector<1x256xf32> to vector<8x256xf32>
    %183 = arith.mulf %182, %180 : vector<8x256xf32>
    %184 = arith.addf %176, %183 : vector<8x256xf32>
    %c0_117 = arith.constant 0 : index
    %c23 = arith.constant 23 : index
    %c0_118 = arith.constant 0 : index
    %185 = vector.load %arg1[%c0_117, %c23, %c0_118] : memref<2x36x256xf32, #tpu.memory_space<vmem>>, vector<1x1x256xf32>
    %186 = vector.shape_cast %185 : vector<1x1x256xf32> to vector<256xf32>
    %c23_119 = arith.constant 23 : index
    %c0_120 = arith.constant 0 : index
    %c0_121 = arith.constant 0 : index
    %187 = vector.load %arg2[%c23_119, %c0_120, %c0_121] : memref<36x8x256xf32, #tpu.memory_space<vmem>>, vector<1x8x256xf32>
    %188 = vector.shape_cast %187 : vector<1x8x256xf32> to vector<8x256xf32>
    %189 = vector.shape_cast %186 : vector<256xf32> to vector<1x256xf32>
    %190 = vector.broadcast %189 : vector<1x256xf32> to vector<8x256xf32>
    %191 = arith.mulf %190, %188 : vector<8x256xf32>
    %192 = arith.addf %184, %191 : vector<8x256xf32>
    %c0_122 = arith.constant 0 : index
    %c24 = arith.constant 24 : index
    %c0_123 = arith.constant 0 : index
    %193 = vector.load %arg1[%c0_122, %c24, %c0_123] : memref<2x36x256xf32, #tpu.memory_space<vmem>>, vector<1x1x256xf32>
    %194 = vector.shape_cast %193 : vector<1x1x256xf32> to vector<256xf32>
    %c24_124 = arith.constant 24 : index
    %c0_125 = arith.constant 0 : index
    %c0_126 = arith.constant 0 : index
    %195 = vector.load %arg2[%c24_124, %c0_125, %c0_126] : memref<36x8x256xf32, #tpu.memory_space<vmem>>, vector<1x8x256xf32>
    %196 = vector.shape_cast %195 : vector<1x8x256xf32> to vector<8x256xf32>
    %197 = vector.shape_cast %194 : vector<256xf32> to vector<1x256xf32>
    %198 = vector.broadcast %197 : vector<1x256xf32> to vector<8x256xf32>
    %199 = arith.mulf %198, %196 : vector<8x256xf32>
    %200 = arith.addf %192, %199 : vector<8x256xf32>
    %c0_127 = arith.constant 0 : index
    %c25 = arith.constant 25 : index
    %c0_128 = arith.constant 0 : index
    %201 = vector.load %arg1[%c0_127, %c25, %c0_128] : memref<2x36x256xf32, #tpu.memory_space<vmem>>, vector<1x1x256xf32>
    %202 = vector.shape_cast %201 : vector<1x1x256xf32> to vector<256xf32>
    %c25_129 = arith.constant 25 : index
    %c0_130 = arith.constant 0 : index
    %c0_131 = arith.constant 0 : index
    %203 = vector.load %arg2[%c25_129, %c0_130, %c0_131] : memref<36x8x256xf32, #tpu.memory_space<vmem>>, vector<1x8x256xf32>
    %204 = vector.shape_cast %203 : vector<1x8x256xf32> to vector<8x256xf32>
    %205 = vector.shape_cast %202 : vector<256xf32> to vector<1x256xf32>
    %206 = vector.broadcast %205 : vector<1x256xf32> to vector<8x256xf32>
    %207 = arith.mulf %206, %204 : vector<8x256xf32>
    %208 = arith.addf %200, %207 : vector<8x256xf32>
    %c0_132 = arith.constant 0 : index
    %c26 = arith.constant 26 : index
    %c0_133 = arith.constant 0 : index
    %209 = vector.load %arg1[%c0_132, %c26, %c0_133] : memref<2x36x256xf32, #tpu.memory_space<vmem>>, vector<1x1x256xf32>
    %210 = vector.shape_cast %209 : vector<1x1x256xf32> to vector<256xf32>
    %c26_134 = arith.constant 26 : index
    %c0_135 = arith.constant 0 : index
    %c0_136 = arith.constant 0 : index
    %211 = vector.load %arg2[%c26_134, %c0_135, %c0_136] : memref<36x8x256xf32, #tpu.memory_space<vmem>>, vector<1x8x256xf32>
    %212 = vector.shape_cast %211 : vector<1x8x256xf32> to vector<8x256xf32>
    %213 = vector.shape_cast %210 : vector<256xf32> to vector<1x256xf32>
    %214 = vector.broadcast %213 : vector<1x256xf32> to vector<8x256xf32>
    %215 = arith.mulf %214, %212 : vector<8x256xf32>
    %216 = arith.addf %208, %215 : vector<8x256xf32>
    %c0_137 = arith.constant 0 : index
    %c27 = arith.constant 27 : index
    %c0_138 = arith.constant 0 : index
    %217 = vector.load %arg1[%c0_137, %c27, %c0_138] : memref<2x36x256xf32, #tpu.memory_space<vmem>>, vector<1x1x256xf32>
    %218 = vector.shape_cast %217 : vector<1x1x256xf32> to vector<256xf32>
    %c27_139 = arith.constant 27 : index
    %c0_140 = arith.constant 0 : index
    %c0_141 = arith.constant 0 : index
    %219 = vector.load %arg2[%c27_139, %c0_140, %c0_141] : memref<36x8x256xf32, #tpu.memory_space<vmem>>, vector<1x8x256xf32>
    %220 = vector.shape_cast %219 : vector<1x8x256xf32> to vector<8x256xf32>
    %221 = vector.shape_cast %218 : vector<256xf32> to vector<1x256xf32>
    %222 = vector.broadcast %221 : vector<1x256xf32> to vector<8x256xf32>
    %223 = arith.mulf %222, %220 : vector<8x256xf32>
    %224 = arith.addf %216, %223 : vector<8x256xf32>
    %c0_142 = arith.constant 0 : index
    %c28 = arith.constant 28 : index
    %c0_143 = arith.constant 0 : index
    %225 = vector.load %arg1[%c0_142, %c28, %c0_143] : memref<2x36x256xf32, #tpu.memory_space<vmem>>, vector<1x1x256xf32>
    %226 = vector.shape_cast %225 : vector<1x1x256xf32> to vector<256xf32>
    %c28_144 = arith.constant 28 : index
    %c0_145 = arith.constant 0 : index
    %c0_146 = arith.constant 0 : index
    %227 = vector.load %arg2[%c28_144, %c0_145, %c0_146] : memref<36x8x256xf32, #tpu.memory_space<vmem>>, vector<1x8x256xf32>
    %228 = vector.shape_cast %227 : vector<1x8x256xf32> to vector<8x256xf32>
    %229 = vector.shape_cast %226 : vector<256xf32> to vector<1x256xf32>
    %230 = vector.broadcast %229 : vector<1x256xf32> to vector<8x256xf32>
    %231 = arith.mulf %230, %228 : vector<8x256xf32>
    %232 = arith.addf %224, %231 : vector<8x256xf32>
    %c0_147 = arith.constant 0 : index
    %c29 = arith.constant 29 : index
    %c0_148 = arith.constant 0 : index
    %233 = vector.load %arg1[%c0_147, %c29, %c0_148] : memref<2x36x256xf32, #tpu.memory_space<vmem>>, vector<1x1x256xf32>
    %234 = vector.shape_cast %233 : vector<1x1x256xf32> to vector<256xf32>
    %c29_149 = arith.constant 29 : index
    %c0_150 = arith.constant 0 : index
    %c0_151 = arith.constant 0 : index
    %235 = vector.load %arg2[%c29_149, %c0_150, %c0_151] : memref<36x8x256xf32, #tpu.memory_space<vmem>>, vector<1x8x256xf32>
    %236 = vector.shape_cast %235 : vector<1x8x256xf32> to vector<8x256xf32>
    %237 = vector.shape_cast %234 : vector<256xf32> to vector<1x256xf32>
    %238 = vector.broadcast %237 : vector<1x256xf32> to vector<8x256xf32>
    %239 = arith.mulf %238, %236 : vector<8x256xf32>
    %240 = arith.addf %232, %239 : vector<8x256xf32>
    %c0_152 = arith.constant 0 : index
    %c30 = arith.constant 30 : index
    %c0_153 = arith.constant 0 : index
    %241 = vector.load %arg1[%c0_152, %c30, %c0_153] : memref<2x36x256xf32, #tpu.memory_space<vmem>>, vector<1x1x256xf32>
    %242 = vector.shape_cast %241 : vector<1x1x256xf32> to vector<256xf32>
    %c30_154 = arith.constant 30 : index
    %c0_155 = arith.constant 0 : index
    %c0_156 = arith.constant 0 : index
    %243 = vector.load %arg2[%c30_154, %c0_155, %c0_156] : memref<36x8x256xf32, #tpu.memory_space<vmem>>, vector<1x8x256xf32>
    %244 = vector.shape_cast %243 : vector<1x8x256xf32> to vector<8x256xf32>
    %245 = vector.shape_cast %242 : vector<256xf32> to vector<1x256xf32>
    %246 = vector.broadcast %245 : vector<1x256xf32> to vector<8x256xf32>
    %247 = arith.mulf %246, %244 : vector<8x256xf32>
    %248 = arith.addf %240, %247 : vector<8x256xf32>
    %c0_157 = arith.constant 0 : index
    %c31 = arith.constant 31 : index
    %c0_158 = arith.constant 0 : index
    %249 = vector.load %arg1[%c0_157, %c31, %c0_158] : memref<2x36x256xf32, #tpu.memory_space<vmem>>, vector<1x1x256xf32>
    %250 = vector.shape_cast %249 : vector<1x1x256xf32> to vector<256xf32>
    %c31_159 = arith.constant 31 : index
    %c0_160 = arith.constant 0 : index
    %c0_161 = arith.constant 0 : index
    %251 = vector.load %arg2[%c31_159, %c0_160, %c0_161] : memref<36x8x256xf32, #tpu.memory_space<vmem>>, vector<1x8x256xf32>
    %252 = vector.shape_cast %251 : vector<1x8x256xf32> to vector<8x256xf32>
    %253 = vector.shape_cast %250 : vector<256xf32> to vector<1x256xf32>
    %254 = vector.broadcast %253 : vector<1x256xf32> to vector<8x256xf32>
    %255 = arith.mulf %254, %252 : vector<8x256xf32>
    %256 = arith.addf %248, %255 : vector<8x256xf32>
    %c0_162 = arith.constant 0 : index
    %c32 = arith.constant 32 : index
    %c0_163 = arith.constant 0 : index
    %257 = vector.load %arg1[%c0_162, %c32, %c0_163] : memref<2x36x256xf32, #tpu.memory_space<vmem>>, vector<1x1x256xf32>
    %258 = vector.shape_cast %257 : vector<1x1x256xf32> to vector<256xf32>
    %c32_164 = arith.constant 32 : index
    %c0_165 = arith.constant 0 : index
    %c0_166 = arith.constant 0 : index
    %259 = vector.load %arg2[%c32_164, %c0_165, %c0_166] : memref<36x8x256xf32, #tpu.memory_space<vmem>>, vector<1x8x256xf32>
    %260 = vector.shape_cast %259 : vector<1x8x256xf32> to vector<8x256xf32>
    %261 = vector.shape_cast %258 : vector<256xf32> to vector<1x256xf32>
    %262 = vector.broadcast %261 : vector<1x256xf32> to vector<8x256xf32>
    %263 = arith.mulf %262, %260 : vector<8x256xf32>
    %264 = arith.addf %256, %263 : vector<8x256xf32>
    %c0_167 = arith.constant 0 : index
    %c33 = arith.constant 33 : index
    %c0_168 = arith.constant 0 : index
    %265 = vector.load %arg1[%c0_167, %c33, %c0_168] : memref<2x36x256xf32, #tpu.memory_space<vmem>>, vector<1x1x256xf32>
    %266 = vector.shape_cast %265 : vector<1x1x256xf32> to vector<256xf32>
    %c33_169 = arith.constant 33 : index
    %c0_170 = arith.constant 0 : index
    %c0_171 = arith.constant 0 : index
    %267 = vector.load %arg2[%c33_169, %c0_170, %c0_171] : memref<36x8x256xf32, #tpu.memory_space<vmem>>, vector<1x8x256xf32>
    %268 = vector.shape_cast %267 : vector<1x8x256xf32> to vector<8x256xf32>
    %269 = vector.shape_cast %266 : vector<256xf32> to vector<1x256xf32>
    %270 = vector.broadcast %269 : vector<1x256xf32> to vector<8x256xf32>
    %271 = arith.mulf %270, %268 : vector<8x256xf32>
    %272 = arith.addf %264, %271 : vector<8x256xf32>
    %c0_172 = arith.constant 0 : index
    %c34 = arith.constant 34 : index
    %c0_173 = arith.constant 0 : index
    %273 = vector.load %arg1[%c0_172, %c34, %c0_173] : memref<2x36x256xf32, #tpu.memory_space<vmem>>, vector<1x1x256xf32>
    %274 = vector.shape_cast %273 : vector<1x1x256xf32> to vector<256xf32>
    %c34_174 = arith.constant 34 : index
    %c0_175 = arith.constant 0 : index
    %c0_176 = arith.constant 0 : index
    %275 = vector.load %arg2[%c34_174, %c0_175, %c0_176] : memref<36x8x256xf32, #tpu.memory_space<vmem>>, vector<1x8x256xf32>
    %276 = vector.shape_cast %275 : vector<1x8x256xf32> to vector<8x256xf32>
    %277 = vector.shape_cast %274 : vector<256xf32> to vector<1x256xf32>
    %278 = vector.broadcast %277 : vector<1x256xf32> to vector<8x256xf32>
    %279 = arith.mulf %278, %276 : vector<8x256xf32>
    %280 = arith.addf %272, %279 : vector<8x256xf32>
    %c0_177 = arith.constant 0 : index
    %c35 = arith.constant 35 : index
    %c0_178 = arith.constant 0 : index
    %281 = vector.load %arg1[%c0_177, %c35, %c0_178] : memref<2x36x256xf32, #tpu.memory_space<vmem>>, vector<1x1x256xf32>
    %282 = vector.shape_cast %281 : vector<1x1x256xf32> to vector<256xf32>
    %c35_179 = arith.constant 35 : index
    %c0_180 = arith.constant 0 : index
    %c0_181 = arith.constant 0 : index
    %283 = vector.load %arg2[%c35_179, %c0_180, %c0_181] : memref<36x8x256xf32, #tpu.memory_space<vmem>>, vector<1x8x256xf32>
    %284 = vector.shape_cast %283 : vector<1x8x256xf32> to vector<8x256xf32>
    %285 = vector.shape_cast %282 : vector<256xf32> to vector<1x256xf32>
    %286 = vector.broadcast %285 : vector<1x256xf32> to vector<8x256xf32>
    %287 = arith.mulf %286, %284 : vector<8x256xf32>
    %288 = arith.addf %280, %287 : vector<8x256xf32>
    %c0_182 = arith.constant 0 : index
    %c0_183 = arith.constant 0 : index
    %c0_184 = arith.constant 0 : index
    %289 = vector.load %arg4[%c0_182, %c0_183, %c0_184] : memref<2x8x256xf32, #tpu.memory_space<vmem>>, vector<1x8x256xf32>
    %290 = vector.shape_cast %289 : vector<1x8x256xf32> to vector<8x256xf32>
    %291 = vector.shape_cast %288 : vector<8x256xf32> to vector<1x8x256xf32>
    tpu.vector_store %arg4[%c0_182, %c0_183, %c0_184], %291 {strides = array<i32>} : memref<2x8x256xf32, #tpu.memory_space<vmem>>, vector<1x8x256xf32>,
    %c0_185 = arith.constant 0 : index
    %c0_186 = arith.constant 0 : index
    %292 = vector.load %arg3[%c0_185, %c0_186] : memref<8x256xf32, #tpu.memory_space<vmem>>, vector<8x256xf32>
    %c1_187 = arith.constant 1 : index
    %c0_188 = arith.constant 0 : index
    %c0_189 = arith.constant 0 : index
    %293 = vector.load %arg1[%c1_187, %c0_188, %c0_189] : memref<2x36x256xf32, #tpu.memory_space<vmem>>, vector<1x1x256xf32>
    %294 = vector.shape_cast %293 : vector<1x1x256xf32> to vector<256xf32>
    %c0_190 = arith.constant 0 : index
    %c0_191 = arith.constant 0 : index
    %c0_192 = arith.constant 0 : index
    %295 = vector.load %arg2[%c0_190, %c0_191, %c0_192] : memref<36x8x256xf32, #tpu.memory_space<vmem>>, vector<1x8x256xf32>
    %296 = vector.shape_cast %295 : vector<1x8x256xf32> to vector<8x256xf32>
    %297 = vector.shape_cast %294 : vector<256xf32> to vector<1x256xf32>
    %298 = vector.broadcast %297 : vector<1x256xf32> to vector<8x256xf32>
    %299 = arith.mulf %298, %296 : vector<8x256xf32>
    %300 = arith.addf %292, %299 : vector<8x256xf32>
    %c1_193 = arith.constant 1 : index
    %c1_194 = arith.constant 1 : index
    %c0_195 = arith.constant 0 : index
    %301 = vector.load %arg1[%c1_193, %c1_194, %c0_195] : memref<2x36x256xf32, #tpu.memory_space<vmem>>, vector<1x1x256xf32>
    %302 = vector.shape_cast %301 : vector<1x1x256xf32> to vector<256xf32>
    %c1_196 = arith.constant 1 : index
    %c0_197 = arith.constant 0 : index
    %c0_198 = arith.constant 0 : index
    %303 = vector.load %arg2[%c1_196, %c0_197, %c0_198] : memref<36x8x256xf32, #tpu.memory_space<vmem>>, vector<1x8x256xf32>
    %304 = vector.shape_cast %303 : vector<1x8x256xf32> to vector<8x256xf32>
    %305 = vector.shape_cast %302 : vector<256xf32> to vector<1x256xf32>
    %306 = vector.broadcast %305 : vector<1x256xf32> to vector<8x256xf32>
    %307 = arith.mulf %306, %304 : vector<8x256xf32>
    %308 = arith.addf %300, %307 : vector<8x256xf32>
    %c1_199 = arith.constant 1 : index
    %c2_200 = arith.constant 2 : index
    %c0_201 = arith.constant 0 : index
    %309 = vector.load %arg1[%c1_199, %c2_200, %c0_201] : memref<2x36x256xf32, #tpu.memory_space<vmem>>, vector<1x1x256xf32>
    %310 = vector.shape_cast %309 : vector<1x1x256xf32> to vector<256xf32>
    %c2_202 = arith.constant 2 : index
    %c0_203 = arith.constant 0 : index
    %c0_204 = arith.constant 0 : index
    %311 = vector.load %arg2[%c2_202, %c0_203, %c0_204] : memref<36x8x256xf32, #tpu.memory_space<vmem>>, vector<1x8x256xf32>
    %312 = vector.shape_cast %311 : vector<1x8x256xf32> to vector<8x256xf32>
    %313 = vector.shape_cast %310 : vector<256xf32> to vector<1x256xf32>
    %314 = vector.broadcast %313 : vector<1x256xf32> to vector<8x256xf32>
    %315 = arith.mulf %314, %312 : vector<8x256xf32>
    %316 = arith.addf %308, %315 : vector<8x256xf32>
    %c1_205 = arith.constant 1 : index
    %c3_206 = arith.constant 3 : index
    %c0_207 = arith.constant 0 : index
    %317 = vector.load %arg1[%c1_205, %c3_206, %c0_207] : memref<2x36x256xf32, #tpu.memory_space<vmem>>, vector<1x1x256xf32>
    %318 = vector.shape_cast %317 : vector<1x1x256xf32> to vector<256xf32>
    %c3_208 = arith.constant 3 : index
    %c0_209 = arith.constant 0 : index
    %c0_210 = arith.constant 0 : index
    %319 = vector.load %arg2[%c3_208, %c0_209, %c0_210] : memref<36x8x256xf32, #tpu.memory_space<vmem>>, vector<1x8x256xf32>
    %320 = vector.shape_cast %319 : vector<1x8x256xf32> to vector<8x256xf32>
    %321 = vector.shape_cast %318 : vector<256xf32> to vector<1x256xf32>
    %322 = vector.broadcast %321 : vector<1x256xf32> to vector<8x256xf32>
    %323 = arith.mulf %322, %320 : vector<8x256xf32>
    %324 = arith.addf %316, %323 : vector<8x256xf32>
    %c1_211 = arith.constant 1 : index
    %c4_212 = arith.constant 4 : index
    %c0_213 = arith.constant 0 : index
    %325 = vector.load %arg1[%c1_211, %c4_212, %c0_213] : memref<2x36x256xf32, #tpu.memory_space<vmem>>, vector<1x1x256xf32>
    %326 = vector.shape_cast %325 : vector<1x1x256xf32> to vector<256xf32>
    %c4_214 = arith.constant 4 : index
    %c0_215 = arith.constant 0 : index
    %c0_216 = arith.constant 0 : index
    %327 = vector.load %arg2[%c4_214, %c0_215, %c0_216] : memref<36x8x256xf32, #tpu.memory_space<vmem>>, vector<1x8x256xf32>
    %328 = vector.shape_cast %327 : vector<1x8x256xf32> to vector<8x256xf32>
    %329 = vector.shape_cast %326 : vector<256xf32> to vector<1x256xf32>
    %330 = vector.broadcast %329 : vector<1x256xf32> to vector<8x256xf32>
    %331 = arith.mulf %330, %328 : vector<8x256xf32>
    %332 = arith.addf %324, %331 : vector<8x256xf32>
    %c1_217 = arith.constant 1 : index
    %c5_218 = arith.constant 5 : index
    %c0_219 = arith.constant 0 : index
    %333 = vector.load %arg1[%c1_217, %c5_218, %c0_219] : memref<2x36x256xf32, #tpu.memory_space<vmem>>, vector<1x1x256xf32>
    %334 = vector.shape_cast %333 : vector<1x1x256xf32> to vector<256xf32>
    %c5_220 = arith.constant 5 : index
    %c0_221 = arith.constant 0 : index
    %c0_222 = arith.constant 0 : index
    %335 = vector.load %arg2[%c5_220, %c0_221, %c0_222] : memref<36x8x256xf32, #tpu.memory_space<vmem>>, vector<1x8x256xf32>
    %336 = vector.shape_cast %335 : vector<1x8x256xf32> to vector<8x256xf32>
    %337 = vector.shape_cast %334 : vector<256xf32> to vector<1x256xf32>
    %338 = vector.broadcast %337 : vector<1x256xf32> to vector<8x256xf32>
    %339 = arith.mulf %338, %336 : vector<8x256xf32>
    %340 = arith.addf %332, %339 : vector<8x256xf32>
    %c1_223 = arith.constant 1 : index
    %c6_224 = arith.constant 6 : index
    %c0_225 = arith.constant 0 : index
    %341 = vector.load %arg1[%c1_223, %c6_224, %c0_225] : memref<2x36x256xf32, #tpu.memory_space<vmem>>, vector<1x1x256xf32>
    %342 = vector.shape_cast %341 : vector<1x1x256xf32> to vector<256xf32>
    %c6_226 = arith.constant 6 : index
    %c0_227 = arith.constant 0 : index
    %c0_228 = arith.constant 0 : index
    %343 = vector.load %arg2[%c6_226, %c0_227, %c0_228] : memref<36x8x256xf32, #tpu.memory_space<vmem>>, vector<1x8x256xf32>
    %344 = vector.shape_cast %343 : vector<1x8x256xf32> to vector<8x256xf32>
    %345 = vector.shape_cast %342 : vector<256xf32> to vector<1x256xf32>
    %346 = vector.broadcast %345 : vector<1x256xf32> to vector<8x256xf32>
    %347 = arith.mulf %346, %344 : vector<8x256xf32>
    %348 = arith.addf %340, %347 : vector<8x256xf32>
    %c1_229 = arith.constant 1 : index
    %c7_230 = arith.constant 7 : index
    %c0_231 = arith.constant 0 : index
    %349 = vector.load %arg1[%c1_229, %c7_230, %c0_231] : memref<2x36x256xf32, #tpu.memory_space<vmem>>, vector<1x1x256xf32>
    %350 = vector.shape_cast %349 : vector<1x1x256xf32> to vector<256xf32>
    %c7_232 = arith.constant 7 : index
    %c0_233 = arith.constant 0 : index
    %c0_234 = arith.constant 0 : index
    %351 = vector.load %arg2[%c7_232, %c0_233, %c0_234] : memref<36x8x256xf32, #tpu.memory_space<vmem>>, vector<1x8x256xf32>
    %352 = vector.shape_cast %351 : vector<1x8x256xf32> to vector<8x256xf32>
    %353 = vector.shape_cast %350 : vector<256xf32> to vector<1x256xf32>
    %354 = vector.broadcast %353 : vector<1x256xf32> to vector<8x256xf32>
    %355 = arith.mulf %354, %352 : vector<8x256xf32>
    %356 = arith.addf %348, %355 : vector<8x256xf32>
    %c1_235 = arith.constant 1 : index
    %c8_236 = arith.constant 8 : index
    %c0_237 = arith.constant 0 : index
    %357 = vector.load %arg1[%c1_235, %c8_236, %c0_237] : memref<2x36x256xf32, #tpu.memory_space<vmem>>, vector<1x1x256xf32>
    %358 = vector.shape_cast %357 : vector<1x1x256xf32> to vector<256xf32>
    %c8_238 = arith.constant 8 : index
    %c0_239 = arith.constant 0 : index
    %c0_240 = arith.constant 0 : index
    %359 = vector.load %arg2[%c8_238, %c0_239, %c0_240] : memref<36x8x256xf32, #tpu.memory_space<vmem>>, vector<1x8x256xf32>
    %360 = vector.shape_cast %359 : vector<1x8x256xf32> to vector<8x256xf32>
    %361 = vector.shape_cast %358 : vector<256xf32> to vector<1x256xf32>
    %362 = vector.broadcast %361 : vector<1x256xf32> to vector<8x256xf32>
    %363 = arith.mulf %362, %360 : vector<8x256xf32>
    %364 = arith.addf %356, %363 : vector<8x256xf32>
    %c1_241 = arith.constant 1 : index
    %c9_242 = arith.constant 9 : index
    %c0_243 = arith.constant 0 : index
    %365 = vector.load %arg1[%c1_241, %c9_242, %c0_243] : memref<2x36x256xf32, #tpu.memory_space<vmem>>, vector<1x1x256xf32>
    %366 = vector.shape_cast %365 : vector<1x1x256xf32> to vector<256xf32>
    %c9_244 = arith.constant 9 : index
    %c0_245 = arith.constant 0 : index
    %c0_246 = arith.constant 0 : index
    %367 = vector.load %arg2[%c9_244, %c0_245, %c0_246] : memref<36x8x256xf32, #tpu.memory_space<vmem>>, vector<1x8x256xf32>
    %368 = vector.shape_cast %367 : vector<1x8x256xf32> to vector<8x256xf32>
    %369 = vector.shape_cast %366 : vector<256xf32> to vector<1x256xf32>
    %370 = vector.broadcast %369 : vector<1x256xf32> to vector<8x256xf32>
    %371 = arith.mulf %370, %368 : vector<8x256xf32>
    %372 = arith.addf %364, %371 : vector<8x256xf32>
    %c1_247 = arith.constant 1 : index
    %c10_248 = arith.constant 10 : index
    %c0_249 = arith.constant 0 : index
    %373 = vector.load %arg1[%c1_247, %c10_248, %c0_249] : memref<2x36x256xf32, #tpu.memory_space<vmem>>, vector<1x1x256xf32>
    %374 = vector.shape_cast %373 : vector<1x1x256xf32> to vector<256xf32>
    %c10_250 = arith.constant 10 : index
    %c0_251 = arith.constant 0 : index
    %c0_252 = arith.constant 0 : index
    %375 = vector.load %arg2[%c10_250, %c0_251, %c0_252] : memref<36x8x256xf32, #tpu.memory_space<vmem>>, vector<1x8x256xf32>
    %376 = vector.shape_cast %375 : vector<1x8x256xf32> to vector<8x256xf32>
    %377 = vector.shape_cast %374 : vector<256xf32> to vector<1x256xf32>
    %378 = vector.broadcast %377 : vector<1x256xf32> to vector<8x256xf32>
    %379 = arith.mulf %378, %376 : vector<8x256xf32>
    %380 = arith.addf %372, %379 : vector<8x256xf32>
    %c1_253 = arith.constant 1 : index
    %c11_254 = arith.constant 11 : index
    %c0_255 = arith.constant 0 : index
    %381 = vector.load %arg1[%c1_253, %c11_254, %c0_255] : memref<2x36x256xf32, #tpu.memory_space<vmem>>, vector<1x1x256xf32>
    %382 = vector.shape_cast %381 : vector<1x1x256xf32> to vector<256xf32>
    %c11_256 = arith.constant 11 : index
    %c0_257 = arith.constant 0 : index
    %c0_258 = arith.constant 0 : index
    %383 = vector.load %arg2[%c11_256, %c0_257, %c0_258] : memref<36x8x256xf32, #tpu.memory_space<vmem>>, vector<1x8x256xf32>
    %384 = vector.shape_cast %383 : vector<1x8x256xf32> to vector<8x256xf32>
    %385 = vector.shape_cast %382 : vector<256xf32> to vector<1x256xf32>
    %386 = vector.broadcast %385 : vector<1x256xf32> to vector<8x256xf32>
    %387 = arith.mulf %386, %384 : vector<8x256xf32>
    %388 = arith.addf %380, %387 : vector<8x256xf32>
    %c1_259 = arith.constant 1 : index
    %c12_260 = arith.constant 12 : index
    %c0_261 = arith.constant 0 : index
    %389 = vector.load %arg1[%c1_259, %c12_260, %c0_261] : memref<2x36x256xf32, #tpu.memory_space<vmem>>, vector<1x1x256xf32>
    %390 = vector.shape_cast %389 : vector<1x1x256xf32> to vector<256xf32>
    %c12_262 = arith.constant 12 : index
    %c0_263 = arith.constant 0 : index
    %c0_264 = arith.constant 0 : index
    %391 = vector.load %arg2[%c12_262, %c0_263, %c0_264] : memref<36x8x256xf32, #tpu.memory_space<vmem>>, vector<1x8x256xf32>
    %392 = vector.shape_cast %391 : vector<1x8x256xf32> to vector<8x256xf32>
    %393 = vector.shape_cast %390 : vector<256xf32> to vector<1x256xf32>
    %394 = vector.broadcast %393 : vector<1x256xf32> to vector<8x256xf32>
    %395 = arith.mulf %394, %392 : vector<8x256xf32>
    %396 = arith.addf %388, %395 : vector<8x256xf32>
    %c1_265 = arith.constant 1 : index
    %c13_266 = arith.constant 13 : index
    %c0_267 = arith.constant 0 : index
    %397 = vector.load %arg1[%c1_265, %c13_266, %c0_267] : memref<2x36x256xf32, #tpu.memory_space<vmem>>, vector<1x1x256xf32>
    %398 = vector.shape_cast %397 : vector<1x1x256xf32> to vector<256xf32>
    %c13_268 = arith.constant 13 : index
    %c0_269 = arith.constant 0 : index
    %c0_270 = arith.constant 0 : index
    %399 = vector.load %arg2[%c13_268, %c0_269, %c0_270] : memref<36x8x256xf32, #tpu.memory_space<vmem>>, vector<1x8x256xf32>
    %400 = vector.shape_cast %399 : vector<1x8x256xf32> to vector<8x256xf32>
    %401 = vector.shape_cast %398 : vector<256xf32> to vector<1x256xf32>
    %402 = vector.broadcast %401 : vector<1x256xf32> to vector<8x256xf32>
    %403 = arith.mulf %402, %400 : vector<8x256xf32>
    %404 = arith.addf %396, %403 : vector<8x256xf32>
    %c1_271 = arith.constant 1 : index
    %c14_272 = arith.constant 14 : index
    %c0_273 = arith.constant 0 : index
    %405 = vector.load %arg1[%c1_271, %c14_272, %c0_273] : memref<2x36x256xf32, #tpu.memory_space<vmem>>, vector<1x1x256xf32>
    %406 = vector.shape_cast %405 : vector<1x1x256xf32> to vector<256xf32>
    %c14_274 = arith.constant 14 : index
    %c0_275 = arith.constant 0 : index
    %c0_276 = arith.constant 0 : index
    %407 = vector.load %arg2[%c14_274, %c0_275, %c0_276] : memref<36x8x256xf32, #tpu.memory_space<vmem>>, vector<1x8x256xf32>
    %408 = vector.shape_cast %407 : vector<1x8x256xf32> to vector<8x256xf32>
    %409 = vector.shape_cast %406 : vector<256xf32> to vector<1x256xf32>
    %410 = vector.broadcast %409 : vector<1x256xf32> to vector<8x256xf32>
    %411 = arith.mulf %410, %408 : vector<8x256xf32>
    %412 = arith.addf %404, %411 : vector<8x256xf32>
    %c1_277 = arith.constant 1 : index
    %c15_278 = arith.constant 15 : index
    %c0_279 = arith.constant 0 : index
    %413 = vector.load %arg1[%c1_277, %c15_278, %c0_279] : memref<2x36x256xf32, #tpu.memory_space<vmem>>, vector<1x1x256xf32>
    %414 = vector.shape_cast %413 : vector<1x1x256xf32> to vector<256xf32>
    %c15_280 = arith.constant 15 : index
    %c0_281 = arith.constant 0 : index
    %c0_282 = arith.constant 0 : index
    %415 = vector.load %arg2[%c15_280, %c0_281, %c0_282] : memref<36x8x256xf32, #tpu.memory_space<vmem>>, vector<1x8x256xf32>
    %416 = vector.shape_cast %415 : vector<1x8x256xf32> to vector<8x256xf32>
    %417 = vector.shape_cast %414 : vector<256xf32> to vector<1x256xf32>
    %418 = vector.broadcast %417 : vector<1x256xf32> to vector<8x256xf32>
    %419 = arith.mulf %418, %416 : vector<8x256xf32>
    %420 = arith.addf %412, %419 : vector<8x256xf32>
    %c1_283 = arith.constant 1 : index
    %c16_284 = arith.constant 16 : index
    %c0_285 = arith.constant 0 : index
    %421 = vector.load %arg1[%c1_283, %c16_284, %c0_285] : memref<2x36x256xf32, #tpu.memory_space<vmem>>, vector<1x1x256xf32>
    %422 = vector.shape_cast %421 : vector<1x1x256xf32> to vector<256xf32>
    %c16_286 = arith.constant 16 : index
    %c0_287 = arith.constant 0 : index
    %c0_288 = arith.constant 0 : index
    %423 = vector.load %arg2[%c16_286, %c0_287, %c0_288] : memref<36x8x256xf32, #tpu.memory_space<vmem>>, vector<1x8x256xf32>
    %424 = vector.shape_cast %423 : vector<1x8x256xf32> to vector<8x256xf32>
    %425 = vector.shape_cast %422 : vector<256xf32> to vector<1x256xf32>
    %426 = vector.broadcast %425 : vector<1x256xf32> to vector<8x256xf32>
    %427 = arith.mulf %426, %424 : vector<8x256xf32>
    %428 = arith.addf %420, %427 : vector<8x256xf32>
    %c1_289 = arith.constant 1 : index
    %c17_290 = arith.constant 17 : index
    %c0_291 = arith.constant 0 : index
    %429 = vector.load %arg1[%c1_289, %c17_290, %c0_291] : memref<2x36x256xf32, #tpu.memory_space<vmem>>, vector<1x1x256xf32>
    %430 = vector.shape_cast %429 : vector<1x1x256xf32> to vector<256xf32>
    %c17_292 = arith.constant 17 : index
    %c0_293 = arith.constant 0 : index
    %c0_294 = arith.constant 0 : index
    %431 = vector.load %arg2[%c17_292, %c0_293, %c0_294] : memref<36x8x256xf32, #tpu.memory_space<vmem>>, vector<1x8x256xf32>
    %432 = vector.shape_cast %431 : vector<1x8x256xf32> to vector<8x256xf32>
    %433 = vector.shape_cast %430 : vector<256xf32> to vector<1x256xf32>
    %434 = vector.broadcast %433 : vector<1x256xf32> to vector<8x256xf32>
    %435 = arith.mulf %434, %432 : vector<8x256xf32>
    %436 = arith.addf %428, %435 : vector<8x256xf32>
    %c1_295 = arith.constant 1 : index
    %c18_296 = arith.constant 18 : index
    %c0_297 = arith.constant 0 : index
    %437 = vector.load %arg1[%c1_295, %c18_296, %c0_297] : memref<2x36x256xf32, #tpu.memory_space<vmem>>, vector<1x1x256xf32>
    %438 = vector.shape_cast %437 : vector<1x1x256xf32> to vector<256xf32>
    %c18_298 = arith.constant 18 : index
    %c0_299 = arith.constant 0 : index
    %c0_300 = arith.constant 0 : index
    %439 = vector.load %arg2[%c18_298, %c0_299, %c0_300] : memref<36x8x256xf32, #tpu.memory_space<vmem>>, vector<1x8x256xf32>
    %440 = vector.shape_cast %439 : vector<1x8x256xf32> to vector<8x256xf32>
    %441 = vector.shape_cast %438 : vector<256xf32> to vector<1x256xf32>
    %442 = vector.broadcast %441 : vector<1x256xf32> to vector<8x256xf32>
    %443 = arith.mulf %442, %440 : vector<8x256xf32>
    %444 = arith.addf %436, %443 : vector<8x256xf32>
    %c1_301 = arith.constant 1 : index
    %c19_302 = arith.constant 19 : index
    %c0_303 = arith.constant 0 : index
    %445 = vector.load %arg1[%c1_301, %c19_302, %c0_303] : memref<2x36x256xf32, #tpu.memory_space<vmem>>, vector<1x1x256xf32>
    %446 = vector.shape_cast %445 : vector<1x1x256xf32> to vector<256xf32>
    %c19_304 = arith.constant 19 : index
    %c0_305 = arith.constant 0 : index
    %c0_306 = arith.constant 0 : index
    %447 = vector.load %arg2[%c19_304, %c0_305, %c0_306] : memref<36x8x256xf32, #tpu.memory_space<vmem>>, vector<1x8x256xf32>
    %448 = vector.shape_cast %447 : vector<1x8x256xf32> to vector<8x256xf32>
    %449 = vector.shape_cast %446 : vector<256xf32> to vector<1x256xf32>
    %450 = vector.broadcast %449 : vector<1x256xf32> to vector<8x256xf32>
    %451 = arith.mulf %450, %448 : vector<8x256xf32>
    %452 = arith.addf %444, %451 : vector<8x256xf32>
    %c1_307 = arith.constant 1 : index
    %c20_308 = arith.constant 20 : index
    %c0_309 = arith.constant 0 : index
    %453 = vector.load %arg1[%c1_307, %c20_308, %c0_309] : memref<2x36x256xf32, #tpu.memory_space<vmem>>, vector<1x1x256xf32>
    %454 = vector.shape_cast %453 : vector<1x1x256xf32> to vector<256xf32>
    %c20_310 = arith.constant 20 : index
    %c0_311 = arith.constant 0 : index
    %c0_312 = arith.constant 0 : index
    %455 = vector.load %arg2[%c20_310, %c0_311, %c0_312] : memref<36x8x256xf32, #tpu.memory_space<vmem>>, vector<1x8x256xf32>
    %456 = vector.shape_cast %455 : vector<1x8x256xf32> to vector<8x256xf32>
    %457 = vector.shape_cast %454 : vector<256xf32> to vector<1x256xf32>
    %458 = vector.broadcast %457 : vector<1x256xf32> to vector<8x256xf32>
    %459 = arith.mulf %458, %456 : vector<8x256xf32>
    %460 = arith.addf %452, %459 : vector<8x256xf32>
    %c1_313 = arith.constant 1 : index
    %c21_314 = arith.constant 21 : index
    %c0_315 = arith.constant 0 : index
    %461 = vector.load %arg1[%c1_313, %c21_314, %c0_315] : memref<2x36x256xf32, #tpu.memory_space<vmem>>, vector<1x1x256xf32>
    %462 = vector.shape_cast %461 : vector<1x1x256xf32> to vector<256xf32>
    %c21_316 = arith.constant 21 : index
    %c0_317 = arith.constant 0 : index
    %c0_318 = arith.constant 0 : index
    %463 = vector.load %arg2[%c21_316, %c0_317, %c0_318] : memref<36x8x256xf32, #tpu.memory_space<vmem>>, vector<1x8x256xf32>
    %464 = vector.shape_cast %463 : vector<1x8x256xf32> to vector<8x256xf32>
    %465 = vector.shape_cast %462 : vector<256xf32> to vector<1x256xf32>
    %466 = vector.broadcast %465 : vector<1x256xf32> to vector<8x256xf32>
    %467 = arith.mulf %466, %464 : vector<8x256xf32>
    %468 = arith.addf %460, %467 : vector<8x256xf32>
    %c1_319 = arith.constant 1 : index
    %c22_320 = arith.constant 22 : index
    %c0_321 = arith.constant 0 : index
    %469 = vector.load %arg1[%c1_319, %c22_320, %c0_321] : memref<2x36x256xf32, #tpu.memory_space<vmem>>, vector<1x1x256xf32>
    %470 = vector.shape_cast %469 : vector<1x1x256xf32> to vector<256xf32>
    %c22_322 = arith.constant 22 : index
    %c0_323 = arith.constant 0 : index
    %c0_324 = arith.constant 0 : index
    %471 = vector.load %arg2[%c22_322, %c0_323, %c0_324] : memref<36x8x256xf32, #tpu.memory_space<vmem>>, vector<1x8x256xf32>
    %472 = vector.shape_cast %471 : vector<1x8x256xf32> to vector<8x256xf32>
    %473 = vector.shape_cast %470 : vector<256xf32> to vector<1x256xf32>
    %474 = vector.broadcast %473 : vector<1x256xf32> to vector<8x256xf32>
    %475 = arith.mulf %474, %472 : vector<8x256xf32>
    %476 = arith.addf %468, %475 : vector<8x256xf32>
    %c1_325 = arith.constant 1 : index
    %c23_326 = arith.constant 23 : index
    %c0_327 = arith.constant 0 : index
    %477 = vector.load %arg1[%c1_325, %c23_326, %c0_327] : memref<2x36x256xf32, #tpu.memory_space<vmem>>, vector<1x1x256xf32>
    %478 = vector.shape_cast %477 : vector<1x1x256xf32> to vector<256xf32>
    %c23_328 = arith.constant 23 : index
    %c0_329 = arith.constant 0 : index
    %c0_330 = arith.constant 0 : index
    %479 = vector.load %arg2[%c23_328, %c0_329, %c0_330] : memref<36x8x256xf32, #tpu.memory_space<vmem>>, vector<1x8x256xf32>
    %480 = vector.shape_cast %479 : vector<1x8x256xf32> to vector<8x256xf32>
    %481 = vector.shape_cast %478 : vector<256xf32> to vector<1x256xf32>
    %482 = vector.broadcast %481 : vector<1x256xf32> to vector<8x256xf32>
    %483 = arith.mulf %482, %480 : vector<8x256xf32>
    %484 = arith.addf %476, %483 : vector<8x256xf32>
    %c1_331 = arith.constant 1 : index
    %c24_332 = arith.constant 24 : index
    %c0_333 = arith.constant 0 : index
    %485 = vector.load %arg1[%c1_331, %c24_332, %c0_333] : memref<2x36x256xf32, #tpu.memory_space<vmem>>, vector<1x1x256xf32>
    %486 = vector.shape_cast %485 : vector<1x1x256xf32> to vector<256xf32>
    %c24_334 = arith.constant 24 : index
    %c0_335 = arith.constant 0 : index
    %c0_336 = arith.constant 0 : index
    %487 = vector.load %arg2[%c24_334, %c0_335, %c0_336] : memref<36x8x256xf32, #tpu.memory_space<vmem>>, vector<1x8x256xf32>
    %488 = vector.shape_cast %487 : vector<1x8x256xf32> to vector<8x256xf32>
    %489 = vector.shape_cast %486 : vector<256xf32> to vector<1x256xf32>
    %490 = vector.broadcast %489 : vector<1x256xf32> to vector<8x256xf32>
    %491 = arith.mulf %490, %488 : vector<8x256xf32>
    %492 = arith.addf %484, %491 : vector<8x256xf32>
    %c1_337 = arith.constant 1 : index
    %c25_338 = arith.constant 25 : index
    %c0_339 = arith.constant 0 : index
    %493 = vector.load %arg1[%c1_337, %c25_338, %c0_339] : memref<2x36x256xf32, #tpu.memory_space<vmem>>, vector<1x1x256xf32>
    %494 = vector.shape_cast %493 : vector<1x1x256xf32> to vector<256xf32>
    %c25_340 = arith.constant 25 : index
    %c0_341 = arith.constant 0 : index
    %c0_342 = arith.constant 0 : index
    %495 = vector.load %arg2[%c25_340, %c0_341, %c0_342] : memref<36x8x256xf32, #tpu.memory_space<vmem>>, vector<1x8x256xf32>
    %496 = vector.shape_cast %495 : vector<1x8x256xf32> to vector<8x256xf32>
    %497 = vector.shape_cast %494 : vector<256xf32> to vector<1x256xf32>
    %498 = vector.broadcast %497 : vector<1x256xf32> to vector<8x256xf32>
    %499 = arith.mulf %498, %496 : vector<8x256xf32>
    %500 = arith.addf %492, %499 : vector<8x256xf32>
    %c1_343 = arith.constant 1 : index
    %c26_344 = arith.constant 26 : index
    %c0_345 = arith.constant 0 : index
    %501 = vector.load %arg1[%c1_343, %c26_344, %c0_345] : memref<2x36x256xf32, #tpu.memory_space<vmem>>, vector<1x1x256xf32>
    %502 = vector.shape_cast %501 : vector<1x1x256xf32> to vector<256xf32>
    %c26_346 = arith.constant 26 : index
    %c0_347 = arith.constant 0 : index
    %c0_348 = arith.constant 0 : index
    %503 = vector.load %arg2[%c26_346, %c0_347, %c0_348] : memref<36x8x256xf32, #tpu.memory_space<vmem>>, vector<1x8x256xf32>
    %504 = vector.shape_cast %503 : vector<1x8x256xf32> to vector<8x256xf32>
    %505 = vector.shape_cast %502 : vector<256xf32> to vector<1x256xf32>
    %506 = vector.broadcast %505 : vector<1x256xf32> to vector<8x256xf32>
    %507 = arith.mulf %506, %504 : vector<8x256xf32>
    %508 = arith.addf %500, %507 : vector<8x256xf32>
    %c1_349 = arith.constant 1 : index
    %c27_350 = arith.constant 27 : index
    %c0_351 = arith.constant 0 : index
    %509 = vector.load %arg1[%c1_349, %c27_350, %c0_351] : memref<2x36x256xf32, #tpu.memory_space<vmem>>, vector<1x1x256xf32>
    %510 = vector.shape_cast %509 : vector<1x1x256xf32> to vector<256xf32>
    %c27_352 = arith.constant 27 : index
    %c0_353 = arith.constant 0 : index
    %c0_354 = arith.constant 0 : index
    %511 = vector.load %arg2[%c27_352, %c0_353, %c0_354] : memref<36x8x256xf32, #tpu.memory_space<vmem>>, vector<1x8x256xf32>
    %512 = vector.shape_cast %511 : vector<1x8x256xf32> to vector<8x256xf32>
    %513 = vector.shape_cast %510 : vector<256xf32> to vector<1x256xf32>
    %514 = vector.broadcast %513 : vector<1x256xf32> to vector<8x256xf32>
    %515 = arith.mulf %514, %512 : vector<8x256xf32>
    %516 = arith.addf %508, %515 : vector<8x256xf32>
    %c1_355 = arith.constant 1 : index
    %c28_356 = arith.constant 28 : index
    %c0_357 = arith.constant 0 : index
    %517 = vector.load %arg1[%c1_355, %c28_356, %c0_357] : memref<2x36x256xf32, #tpu.memory_space<vmem>>, vector<1x1x256xf32>
    %518 = vector.shape_cast %517 : vector<1x1x256xf32> to vector<256xf32>
    %c28_358 = arith.constant 28 : index
    %c0_359 = arith.constant 0 : index
    %c0_360 = arith.constant 0 : index
    %519 = vector.load %arg2[%c28_358, %c0_359, %c0_360] : memref<36x8x256xf32, #tpu.memory_space<vmem>>, vector<1x8x256xf32>
    %520 = vector.shape_cast %519 : vector<1x8x256xf32> to vector<8x256xf32>
    %521 = vector.shape_cast %518 : vector<256xf32> to vector<1x256xf32>
    %522 = vector.broadcast %521 : vector<1x256xf32> to vector<8x256xf32>
    %523 = arith.mulf %522, %520 : vector<8x256xf32>
    %524 = arith.addf %516, %523 : vector<8x256xf32>
    %c1_361 = arith.constant 1 : index
    %c29_362 = arith.constant 29 : index
    %c0_363 = arith.constant 0 : index
    %525 = vector.load %arg1[%c1_361, %c29_362, %c0_363] : memref<2x36x256xf32, #tpu.memory_space<vmem>>, vector<1x1x256xf32>
    %526 = vector.shape_cast %525 : vector<1x1x256xf32> to vector<256xf32>
    %c29_364 = arith.constant 29 : index
    %c0_365 = arith.constant 0 : index
    %c0_366 = arith.constant 0 : index
    %527 = vector.load %arg2[%c29_364, %c0_365, %c0_366] : memref<36x8x256xf32, #tpu.memory_space<vmem>>, vector<1x8x256xf32>
    %528 = vector.shape_cast %527 : vector<1x8x256xf32> to vector<8x256xf32>
    %529 = vector.shape_cast %526 : vector<256xf32> to vector<1x256xf32>
    %530 = vector.broadcast %529 : vector<1x256xf32> to vector<8x256xf32>
    %531 = arith.mulf %530, %528 : vector<8x256xf32>
    %532 = arith.addf %524, %531 : vector<8x256xf32>
    %c1_367 = arith.constant 1 : index
    %c30_368 = arith.constant 30 : index
    %c0_369 = arith.constant 0 : index
    %533 = vector.load %arg1[%c1_367, %c30_368, %c0_369] : memref<2x36x256xf32, #tpu.memory_space<vmem>>, vector<1x1x256xf32>
    %534 = vector.shape_cast %533 : vector<1x1x256xf32> to vector<256xf32>
    %c30_370 = arith.constant 30 : index
    %c0_371 = arith.constant 0 : index
    %c0_372 = arith.constant 0 : index
    %535 = vector.load %arg2[%c30_370, %c0_371, %c0_372] : memref<36x8x256xf32, #tpu.memory_space<vmem>>, vector<1x8x256xf32>
    %536 = vector.shape_cast %535 : vector<1x8x256xf32> to vector<8x256xf32>
    %537 = vector.shape_cast %534 : vector<256xf32> to vector<1x256xf32>
    %538 = vector.broadcast %537 : vector<1x256xf32> to vector<8x256xf32>
    %539 = arith.mulf %538, %536 : vector<8x256xf32>
    %540 = arith.addf %532, %539 : vector<8x256xf32>
    %c1_373 = arith.constant 1 : index
    %c31_374 = arith.constant 31 : index
    %c0_375 = arith.constant 0 : index
    %541 = vector.load %arg1[%c1_373, %c31_374, %c0_375] : memref<2x36x256xf32, #tpu.memory_space<vmem>>, vector<1x1x256xf32>
    %542 = vector.shape_cast %541 : vector<1x1x256xf32> to vector<256xf32>
    %c31_376 = arith.constant 31 : index
    %c0_377 = arith.constant 0 : index
    %c0_378 = arith.constant 0 : index
    %543 = vector.load %arg2[%c31_376, %c0_377, %c0_378] : memref<36x8x256xf32, #tpu.memory_space<vmem>>, vector<1x8x256xf32>
    %544 = vector.shape_cast %543 : vector<1x8x256xf32> to vector<8x256xf32>
    %545 = vector.shape_cast %542 : vector<256xf32> to vector<1x256xf32>
    %546 = vector.broadcast %545 : vector<1x256xf32> to vector<8x256xf32>
    %547 = arith.mulf %546, %544 : vector<8x256xf32>
    %548 = arith.addf %540, %547 : vector<8x256xf32>
    %c1_379 = arith.constant 1 : index
    %c32_380 = arith.constant 32 : index
    %c0_381 = arith.constant 0 : index
    %549 = vector.load %arg1[%c1_379, %c32_380, %c0_381] : memref<2x36x256xf32, #tpu.memory_space<vmem>>, vector<1x1x256xf32>
    %550 = vector.shape_cast %549 : vector<1x1x256xf32> to vector<256xf32>
    %c32_382 = arith.constant 32 : index
    %c0_383 = arith.constant 0 : index
    %c0_384 = arith.constant 0 : index
    %551 = vector.load %arg2[%c32_382, %c0_383, %c0_384] : memref<36x8x256xf32, #tpu.memory_space<vmem>>, vector<1x8x256xf32>
    %552 = vector.shape_cast %551 : vector<1x8x256xf32> to vector<8x256xf32>
    %553 = vector.shape_cast %550 : vector<256xf32> to vector<1x256xf32>
    %554 = vector.broadcast %553 : vector<1x256xf32> to vector<8x256xf32>
    %555 = arith.mulf %554, %552 : vector<8x256xf32>
    %556 = arith.addf %548, %555 : vector<8x256xf32>
    %c1_385 = arith.constant 1 : index
    %c33_386 = arith.constant 33 : index
    %c0_387 = arith.constant 0 : index
    %557 = vector.load %arg1[%c1_385, %c33_386, %c0_387] : memref<2x36x256xf32, #tpu.memory_space<vmem>>, vector<1x1x256xf32>
    %558 = vector.shape_cast %557 : vector<1x1x256xf32> to vector<256xf32>
    %c33_388 = arith.constant 33 : index
    %c0_389 = arith.constant 0 : index
    %c0_390 = arith.constant 0 : index
    %559 = vector.load %arg2[%c33_388, %c0_389, %c0_390] : memref<36x8x256xf32, #tpu.memory_space<vmem>>, vector<1x8x256xf32>
    %560 = vector.shape_cast %559 : vector<1x8x256xf32> to vector<8x256xf32>
    %561 = vector.shape_cast %558 : vector<256xf32> to vector<1x256xf32>
    %562 = vector.broadcast %561 : vector<1x256xf32> to vector<8x256xf32>
    %563 = arith.mulf %562, %560 : vector<8x256xf32>
    %564 = arith.addf %556, %563 : vector<8x256xf32>
    %c1_391 = arith.constant 1 : index
    %c34_392 = arith.constant 34 : index
    %c0_393 = arith.constant 0 : index
    %565 = vector.load %arg1[%c1_391, %c34_392, %c0_393] : memref<2x36x256xf32, #tpu.memory_space<vmem>>, vector<1x1x256xf32>
    %566 = vector.shape_cast %565 : vector<1x1x256xf32> to vector<256xf32>
    %c34_394 = arith.constant 34 : index
    %c0_395 = arith.constant 0 : index
    %c0_396 = arith.constant 0 : index
    %567 = vector.load %arg2[%c34_394, %c0_395, %c0_396] : memref<36x8x256xf32, #tpu.memory_space<vmem>>, vector<1x8x256xf32>
    %568 = vector.shape_cast %567 : vector<1x8x256xf32> to vector<8x256xf32>
    %569 = vector.shape_cast %566 : vector<256xf32> to vector<1x256xf32>
    %570 = vector.broadcast %569 : vector<1x256xf32> to vector<8x256xf32>
    %571 = arith.mulf %570, %568 : vector<8x256xf32>
    %572 = arith.addf %564, %571 : vector<8x256xf32>
    %c1_397 = arith.constant 1 : index
    %c35_398 = arith.constant 35 : index
    %c0_399 = arith.constant 0 : index
    %573 = vector.load %arg1[%c1_397, %c35_398, %c0_399] : memref<2x36x256xf32, #tpu.memory_space<vmem>>, vector<1x1x256xf32>
    %574 = vector.shape_cast %573 : vector<1x1x256xf32> to vector<256xf32>
    %c35_400 = arith.constant 35 : index
    %c0_401 = arith.constant 0 : index
    %c0_402 = arith.constant 0 : index
    %575 = vector.load %arg2[%c35_400, %c0_401, %c0_402] : memref<36x8x256xf32, #tpu.memory_space<vmem>>, vector<1x8x256xf32>
    %576 = vector.shape_cast %575 : vector<1x8x256xf32> to vector<8x256xf32>
    %577 = vector.shape_cast %574 : vector<256xf32> to vector<1x256xf32>
    %578 = vector.broadcast %577 : vector<1x256xf32> to vector<8x256xf32>
    %579 = arith.mulf %578, %576 : vector<8x256xf32>
    %580 = arith.addf %572, %579 : vector<8x256xf32>
    %c1_403 = arith.constant 1 : index
    %c0_404 = arith.constant 0 : index
    %c0_405 = arith.constant 0 : index
    %581 = vector.load %arg4[%c1_403, %c0_404, %c0_405] : memref<2x8x256xf32, #tpu.memory_space<vmem>>, vector<1x8x256xf32>
    %582 = vector.shape_cast %581 : vector<1x8x256xf32> to vector<8x256xf32>
    %583 = vector.shape_cast %580 : vector<8x256xf32> to vector<1x8x256xf32>
    tpu.vector_store %arg4[%c1_403, %c0_404, %c0_405], %583 {strides = array<i32>} : memref<2x8x256xf32, #tpu.memory_space<vmem>>, vector<1x8x256xf32>,
    return
  }
  func.func @transform_0(%arg0: i32) -> (i32, i32, i32) {
    %c0_i32 = arith.constant 0 : i32
    %c0_i32_0 = arith.constant 0 : i32
    %c0_i32_1 = arith.constant 0 : i32
    %c0_i32_2 = arith.constant 0 : i32
    return %c0_i32, %c0_i32_0, %c0_i32_1 : i32, i32, i32
  }
  func.func @transform_1(%arg0: i32) -> (i32, i32, i32) {
    %c0_i32 = arith.constant 0 : i32
    %c0_i32_0 = arith.constant 0 : i32
    %c0_i32_1 = arith.constant 0 : i32
    %c0_i32_2 = arith.constant 0 : i32
    return %c0_i32, %c0_i32_0, %c0_i32_1 : i32, i32, i32
  }
  func.func @transform_2(%arg0: i32) -> (i32, i32) {
    %c0_i32 = arith.constant 0 : i32
    %c0_i32_0 = arith.constant 0 : i32
    %c0_i32_1 = arith.constant 0 : i32
    return %c0_i32, %c0_i32_0 : i32, i32
  }
  func.func @transform_3(%arg0: i32) -> (i32, i32, i32) {
    %c0_i32 = arith.constant 0 : i32
    %c0_i32_0 = arith.constant 0 : i32
    %c0_i32_1 = arith.constant 0 : i32
    %c0_i32_2 = arith.constant 0 : i32
    return %c0_i32, %c0_i32_0, %c0_i32_1 : i32, i32, i32
  }
}

</mosaic_0001>

<llo_original>
// kernel: local_linear_forward.1
$region0: #{local_linear_forward.1}
  #allocation0 [shape = 'u32[]', space=smem, size = 0x4, offset = 0x4, fixed_abs, tag = 'smem constant byte address 0x4 - core index']
  #allocation1 [shape = 'u32[72,128]{1,0:T(1,128)}', space=vmem, size = 0x9000, scoped, tag = 'internal scratch']
  %s0 = inlined_call_operand.vmem [shape: f32[2,36,256], index: 0, kind: input, shape index: {}]
  %s1 = inlined_call_operand.vmem [shape: f32[36,8,256], index: 1, kind: input, shape index: {}]
  %s2 = inlined_call_operand.vmem [shape: f32[8,256], index: 2, kind: input, shape index: {}]
  %s3 = inlined_call_operand.vmem [shape: f32[2,8,256], index: 3, kind: output, shape index: {}]
  %s4 = sld [smem:[#allocation0]]
  $region22: #{local_linear_forward.1} parent=0
    _
  %s6 = ssub.s32 1, %s4
  %s7 = scalar_select 0, %s6, %s4
  // Predicated region
  $region2: #{local_linear_forward.1} parent=0 // pred_check
    _
  $region3: #{local_linear_forward.1} parent=0 // pred_check_branch
    %9 = sbr.rel (0) target = $region5
  $region4: #{local_linear_forward.1} parent=0 // pred_region
    _
  $region5: #{local_linear_forward.1} parent=0 // pred_fallthru
    _
  // Predicated region
  $region6: #{local_linear_forward.1} parent=0 // pred_check
    _
  $region7: #{local_linear_forward.1} parent=0 // pred_check_branch
    %11 = sbr.rel (0) target = $region9
  $region8: #{local_linear_forward.1} parent=0 // pred_region
    _
  $region9: #{local_linear_forward.1} parent=0 // pred_fallthru
    _
  // Predicated region
  $region10: #{local_linear_forward.1} parent=0 // pred_check
    _
  $region11: #{local_linear_forward.1} parent=0 // pred_check_branch
    %13 = sbr.rel (0) target = $region13
  $region12: #{local_linear_forward.1} parent=0 // pred_region
    _
  $region13: #{local_linear_forward.1} parent=0 // pred_fallthru
    _
  %v14 = vld [vmem:[%s2] sm:$0xff]
  %v15 = vld [vmem:[%s2 + $0x8] sm:$0xff]
  %v16 = vld [vmem:[%s0] ss:$8 sm:$0x3]
  %v17 = vld [vmem:[%s1] sm:$0xff]
  %v18 = vld [vmem:[%s1 + $0x8] sm:$0xff]
  %v20 = vperm.slane %v16, 0
  %v21 = vperm.slane %v16, 1
  %v24 = vmul.f32 %v20, %v17
  %v25 = vmul.f32 %v21, %v18
  %v26 = vadd.f32 %v14, %v24
  %v27 = vadd.f32 %v15, %v25
  %s28 = scalar_lea.vmem %s0, 1
  %v29 = vld [vmem:[%s28] ss:$8 sm:$0x3]
  %s30 = scalar_lea.vmem %s1, 16
  %v31 = vld [vmem:[%s30] sm:$0xff]
  %v32 = vld [vmem:[%s30 + $0x8] sm:$0xff]
  %v34 = vperm.slane %v29, 0
  %v35 = vperm.slane %v29, 1
  %v38 = vmul.f32 %v34, %v31
  %v39 = vmul.f32 %v35, %v32
  %v40 = vadd.f32 %v26, %v38
  %v41 = vadd.f32 %v27, %v39
  %s42 = scalar_lea.vmem %s0, 2
  %v43 = vld [vmem:[%s42] ss:$8 sm:$0x3]
  %s44 = scalar_lea.vmem %s1, 32
  %v45 = vld [vmem:[%s44] sm:$0xff]
  %v46 = vld [vmem:[%s44 + $0x8] sm:$0xff]
  %v48 = vperm.slane %v43, 0
  %v49 = vperm.slane %v43, 1
  %v52 = vmul.f32 %v48, %v45
  %v53 = vmul.f32 %v49, %v46
  %v54 = vadd.f32 %v40, %v52
  %v55 = vadd.f32 %v41, %v53
  %s56 = scalar_lea.vmem %s0, 3
  %v57 = vld [vmem:[%s56] ss:$8 sm:$0x3]
  %s58 = scalar_lea.vmem %s1, 48
  %v59 = vld [vmem:[%s58] sm:$0xff]
  %v60 = vld [vmem:[%s58 + $0x8] sm:$0xff]
  %v62 = vperm.slane %v57, 0
  %v63 = vperm.slane %v57, 1
  %v66 = vmul.f32 %v62, %v59
  %v67 = vmul.f32 %v63, %v60
  %v68 = vadd.f32 %v54, %v66
  %v69 = vadd.f32 %v55, %v67
  %s70 = scalar_lea.vmem %s0, 4
  %v71 = vld [vmem:[%s70] ss:$8 sm:$0x3]
  %s72 = scalar_lea.vmem %s1, 64
  %v73 = vld [vmem:[%s72] sm:$0xff]
  %v74 = vld [vmem:[%s72 + $0x8] sm:$0xff]
  %v76 = vperm.slane %v71, 0
  %v77 = vperm.slane %v71, 1
  %v80 = vmul.f32 %v76, %v73
  %v81 = vmul.f32 %v77, %v74
  %v82 = vadd.f32 %v68, %v80
  %v83 = vadd.f32 %v69, %v81
  %s84 = scalar_lea.vmem %s0, 5
  %v85 = vld [vmem:[%s84] ss:$8 sm:$0x3]
  %s86 = scalar_lea.vmem %s1, 80
  %v87 = vld [vmem:[%s86] sm:$0xff]
  %v88 = vld [vmem:[%s86 + $0x8] sm:$0xff]
  %v90 = vperm.slane %v85, 0
  %v91 = vperm.slane %v85, 1
  %v94 = vmul.f32 %v90, %v87
  %v95 = vmul.f32 %v91, %v88
  %v96 = vadd.f32 %v82, %v94
  %v97 = vadd.f32 %v83, %v95
  %s98 = scalar_lea.vmem %s0, 6
  %v99 = vld [vmem:[%s98] ss:$8 sm:$0x3]
  %s100 = scalar_lea.vmem %s1, 96
  %v101 = vld [vmem:[%s100] sm:$0xff]
  %v102 = vld [vmem:[%s100 + $0x8] sm:$0xff]
  %v104 = vperm.slane %v99, 0
  %v105 = vperm.slane %v99, 1
  %v108 = vmul.f32 %v104, %v101
  %v109 = vmul.f32 %v105, %v102
  %v110 = vadd.f32 %v96, %v108
  %v111 = vadd.f32 %v97, %v109
  %s112 = scalar_lea.vmem %s0, 7
  %v113 = vld [vmem:[%s112] ss:$8 sm:$0x3]
  %s114 = scalar_lea.vmem %s1, 112
  %v115 = vld [vmem:[%s114] sm:$0xff]
  %v116 = vld [vmem:[%s114 + $0x8] sm:$0xff]
  %v118 = vperm.slane %v113, 0
  %v119 = vperm.slane %v113, 1
  %v122 = vmul.f32 %v118, %v115
  %v123 = vmul.f32 %v119, %v116
  %v124 = vadd.f32 %v110, %v122
  %v125 = vadd.f32 %v111, %v123
  %s126 = scalar_lea.vmem %s0, 16
  %v127 = vld [vmem:[%s126] ss:$8 sm:$0x3]
  %s128 = scalar_lea.vmem %s1, 128
  %v129 = vld [vmem:[%s128] sm:$0xff]
  %v130 = vld [vmem:[%s128 + $0x8] sm:$0xff]
  %v132 = vperm.slane %v127, 0
  %v133 = vperm.slane %v127, 1
  %v136 = vmul.f32 %v132, %v129
  %v137 = vmul.f32 %v133, %v130
  %v138 = vadd.f32 %v124, %v136
  %v139 = vadd.f32 %v125, %v137
  %s140 = scalar_lea.vmem %s0, 17
  %v141 = vld [vmem:[%s140] ss:$8 sm:$0x3]
  %s142 = scalar_lea.vmem %s1, 144
  %v143 = vld [vmem:[%s142] sm:$0xff]
  %v144 = vld [vmem:[%s142 + $0x8] sm:$0xff]
  %v146 = vperm.slane %v141, 0
  %v147 = vperm.slane %v141, 1
  %v150 = vmul.f32 %v146, %v143
  %v151 = vmul.f32 %v147, %v144
  %v152 = vadd.f32 %v138, %v150
  %v153 = vadd.f32 %v139, %v151
  %s154 = scalar_lea.vmem %s0, 18
  %v155 = vld [vmem:[%s154] ss:$8 sm:$0x3]
  %s156 = scalar_lea.vmem %s1, 160
  %v157 = vld [vmem:[%s156] sm:$0xff]
  %v158 = vld [vmem:[%s156 + $0x8] sm:$0xff]
  %v160 = vperm.slane %v155, 0
  %v161 = vperm.slane %v155, 1
  %v164 = vmul.f32 %v160, %v157
  %v165 = vmul.f32 %v161, %v158
  %v166 = vadd.f32 %v152, %v164
  %v167 = vadd.f32 %v153, %v165
  %s168 = scalar_lea.vmem %s0, 19
  %v169 = vld [vmem:[%s168] ss:$8 sm:$0x3]
  %s170 = scalar_lea.vmem %s1, 176
  %v171 = vld [vmem:[%s170] sm:$0xff]
  %v172 = vld [vmem:[%s170 + $0x8] sm:$0xff]
  %v174 = vperm.slane %v169, 0
  %v175 = vperm.slane %v169, 1
  %v178 = vmul.f32 %v174, %v171
  %v179 = vmul.f32 %v175, %v172
  %v180 = vadd.f32 %v166, %v178
  %v181 = vadd.f32 %v167, %v179
  %s182 = scalar_lea.vmem %s0, 20
  %v183 = vld [vmem:[%s182] ss:$8 sm:$0x3]
  %s184 = scalar_lea.vmem %s1, 192
  %v185 = vld [vmem:[%s184] sm:$0xff]
  %v186 = vld [vmem:[%s184 + $0x8] sm:$0xff]
  %v188 = vperm.slane %v183, 0
  %v189 = vperm.slane %v183, 1
  %v192 = vmul.f32 %v188, %v185
  %v193 = vmul.f32 %v189, %v186
  %v194 = vadd.f32 %v180, %v192
  %v195 = vadd.f32 %v181, %v193
  %s196 = scalar_lea.vmem %s0, 21
  %v197 = vld [vmem:[%s196] ss:$8 sm:$0x3]
  %s198 = scalar_lea.vmem %s1, 208
  %v199 = vld [vmem:[%s198] sm:$0xff]
  %v200 = vld [vmem:[%s198 + $0x8] sm:$0xff]
  %v202 = vperm.slane %v197, 0
  %v203 = vperm.slane %v197, 1
  %v206 = vmul.f32 %v202, %v199
  %v207 = vmul.f32 %v203, %v200
  %v208 = vadd.f32 %v194, %v206
  %v209 = vadd.f32 %v195, %v207
  %s210 = scalar_lea.vmem %s0, 22
  %v211 = vld [vmem:[%s210] ss:$8 sm:$0x3]
  %s212 = scalar_lea.vmem %s1, 224
  %v213 = vld [vmem:[%s212] sm:$0xff]
  %v214 = vld [vmem:[%s212 + $0x8] sm:$0xff]
  %v216 = vperm.slane %v211, 0
  %v217 = vperm.slane %v211, 1
  %v220 = vmul.f32 %v216, %v213
  %v221 = vmul.f32 %v217, %v214
  %v222 = vadd.f32 %v208, %v220
  %v223 = vadd.f32 %v209, %v221
  %s224 = scalar_lea.vmem %s0, 23
  %v225 = vld [vmem:[%s224] ss:$8 sm:$0x3]
  %s226 = scalar_lea.vmem %s1, 240
  %v227 = vld [vmem:[%s226] sm:$0xff]
  %v228 = vld [vmem:[%s226 + $0x8] sm:$0xff]
  %v230 = vperm.slane %v225, 0
  %v231 = vperm.slane %v225, 1
  %v234 = vmul.f32 %v230, %v227
  %v235 = vmul.f32 %v231, %v228
  %v236 = vadd.f32 %v222, %v234
  %v237 = vadd.f32 %v223, %v235
  %s238 = scalar_lea.vmem %s0, 32
  %v239 = vld [vmem:[%s238] ss:$8 sm:$0x3]
  %s240 = scalar_lea.vmem %s1, 256
  %v241 = vld [vmem:[%s240] sm:$0xff]
  %v242 = vld [vmem:[%s240 + $0x8] sm:$0xff]
  %v244 = vperm.slane %v239, 0
  %v245 = vperm.slane %v239, 1
  %v248 = vmul.f32 %v244, %v241
  %v249 = vmul.f32 %v245, %v242
  %v250 = vadd.f32 %v236, %v248
  %v251 = vadd.f32 %v237, %v249
  %s252 = scalar_lea.vmem %s0, 33
  %v253 = vld [vmem:[%s252] ss:$8 sm:$0x3]
  %s254 = scalar_lea.vmem %s1, 272
  %v255 = vld [vmem:[%s254] sm:$0xff]
  %v256 = vld [vmem:[%s254 + $0x8] sm:$0xff]
  %v258 = vperm.slane %v253, 0
  %v259 = vperm.slane %v253, 1
  %v262 = vmul.f32 %v258, %v255
  %v263 = vmul.f32 %v259, %v256
  %v264 = vadd.f32 %v250, %v262
  %v265 = vadd.f32 %v251, %v263
  %s266 = scalar_lea.vmem %s0, 34
  %v267 = vld [vmem:[%s266] ss:$8 sm:$0x3]
  %s268 = scalar_lea.vmem %s1, 288
  %v269 = vld [vmem:[%s268] sm:$0xff]
  %v270 = vld [vmem:[%s268 + $0x8] sm:$0xff]
  %v272 = vperm.slane %v267, 0
  %v273 = vperm.slane %v267, 1
  %v276 = vmul.f32 %v272, %v269
  %v277 = vmul.f32 %v273, %v270
  %v278 = vadd.f32 %v264, %v276
  %v279 = vadd.f32 %v265, %v277
  %s280 = scalar_lea.vmem %s0, 35
  %v281 = vld [vmem:[%s280] ss:$8 sm:$0x3]
  %s282 = scalar_lea.vmem %s1, 304
  %v283 = vld [vmem:[%s282] sm:$0xff]
  %v284 = vld [vmem:[%s282 + $0x8] sm:$0xff]
  %v286 = vperm.slane %v281, 0
  %v287 = vperm.slane %v281, 1
  %v290 = vmul.f32 %v286, %v283
  %v291 = vmul.f32 %v287, %v284
  %v292 = vadd.f32 %v278, %v290
  %v293 = vadd.f32 %v279, %v291
  %s294 = scalar_lea.vmem %s0, 36
  %v295 = vld [vmem:[%s294] ss:$8 sm:$0x3]
  %s296 = scalar_lea.vmem %s1, 320
  %v297 = vld [vmem:[%s296] sm:$0xff]
  %v298 = vld [vmem:[%s296 + $0x8] sm:$0xff]
  %v300 = vperm.slane %v295, 0
  %v301 = vperm.slane %v295, 1
  %v304 = vmul.f32 %v300, %v297
  %v305 = vmul.f32 %v301, %v298
  %v306 = vadd.f32 %v292, %v304
  %v307 = vadd.f32 %v293, %v305
  %s308 = scalar_lea.vmem %s0, 37
  %v309 = vld [vmem:[%s308] ss:$8 sm:$0x3]
  %s310 = scalar_lea.vmem %s1, 336
  %v311 = vld [vmem:[%s310] sm:$0xff]
  %v312 = vld [vmem:[%s310 + $0x8] sm:$0xff]
  %v314 = vperm.slane %v309, 0
  %v315 = vperm.slane %v309, 1
  %v318 = vmul.f32 %v314, %v311
  %v319 = vmul.f32 %v315, %v312
  %v320 = vadd.f32 %v306, %v318
  %v321 = vadd.f32 %v307, %v319
  %s322 = scalar_lea.vmem %s0, 38
  %v323 = vld [vmem:[%s322] ss:$8 sm:$0x3]
  %s324 = scalar_lea.vmem %s1, 352
  %v325 = vld [vmem:[%s324] sm:$0xff]
  %v326 = vld [vmem:[%s324 + $0x8] sm:$0xff]
  %v328 = vperm.slane %v323, 0
  %v329 = vperm.slane %v323, 1
  %v332 = vmul.f32 %v328, %v325
  %v333 = vmul.f32 %v329, %v326
  %v334 = vadd.f32 %v320, %v332
  %v335 = vadd.f32 %v321, %v333
  %s336 = scalar_lea.vmem %s0, 39
  %v337 = vld [vmem:[%s336] ss:$8 sm:$0x3]
  %s338 = scalar_lea.vmem %s1, 368
  %v339 = vld [vmem:[%s338] sm:$0xff]
  %v340 = vld [vmem:[%s338 + $0x8] sm:$0xff]
  %v342 = vperm.slane %v337, 0
  %v343 = vperm.slane %v337, 1
  %v346 = vmul.f32 %v342, %v339
  %v347 = vmul.f32 %v343, %v340
  %v348 = vadd.f32 %v334, %v346
  %v349 = vadd.f32 %v335, %v347
  %s350 = scalar_lea.vmem %s0, 48
  %v351 = vld [vmem:[%s350] ss:$8 sm:$0x3]
  %s352 = scalar_lea.vmem %s1, 384
  %v353 = vld [vmem:[%s352] sm:$0xff]
  %v354 = vld [vmem:[%s352 + $0x8] sm:$0xff]
  %v356 = vperm.slane %v351, 0
  %v357 = vperm.slane %v351, 1
  %v360 = vmul.f32 %v356, %v353
  %v361 = vmul.f32 %v357, %v354
  %v362 = vadd.f32 %v348, %v360
  %v363 = vadd.f32 %v349, %v361
  %s364 = scalar_lea.vmem %s0, 49
  %v365 = vld [vmem:[%s364] ss:$8 sm:$0x3]
  %s366 = scalar_lea.vmem %s1, 400
  %v367 = vld [vmem:[%s366] sm:$0xff]
  %v368 = vld [vmem:[%s366 + $0x8] sm:$0xff]
  %v370 = vperm.slane %v365, 0
  %v371 = vperm.slane %v365, 1
  %v374 = vmul.f32 %v370, %v367
  %v375 = vmul.f32 %v371, %v368
  %v376 = vadd.f32 %v362, %v374
  %v377 = vadd.f32 %v363, %v375
  %s378 = scalar_lea.vmem %s0, 50
  %v379 = vld [vmem:[%s378] ss:$8 sm:$0x3]
  %s380 = scalar_lea.vmem %s1, 416
  %v381 = vld [vmem:[%s380] sm:$0xff]
  %v382 = vld [vmem:[%s380 + $0x8] sm:$0xff]
  %v384 = vperm.slane %v379, 0
  %v385 = vperm.slane %v379, 1
  %v388 = vmul.f32 %v384, %v381
  %v389 = vmul.f32 %v385, %v382
  %v390 = vadd.f32 %v376, %v388
  %v391 = vadd.f32 %v377, %v389
  %s392 = scalar_lea.vmem %s0, 51
  %v393 = vld [vmem:[%s392] ss:$8 sm:$0x3]
  %s394 = scalar_lea.vmem %s1, 432
  %v395 = vld [vmem:[%s394] sm:$0xff]
  %v396 = vld [vmem:[%s394 + $0x8] sm:$0xff]
  %v398 = vperm.slane %v393, 0
  %v399 = vperm.slane %v393, 1
  %v402 = vmul.f32 %v398, %v395
  %v403 = vmul.f32 %v399, %v396
  %v404 = vadd.f32 %v390, %v402
  %v405 = vadd.f32 %v391, %v403
  %s406 = scalar_lea.vmem %s0, 52
  %v407 = vld [vmem:[%s406] ss:$8 sm:$0x3]
  %s408 = scalar_lea.vmem %s1, 448
  %v409 = vld [vmem:[%s408] sm:$0xff]
  %v410 = vld [vmem:[%s408 + $0x8] sm:$0xff]
  %v412 = vperm.slane %v407, 0
  %v413 = vperm.slane %v407, 1
  %v416 = vmul.f32 %v412, %v409
  %v417 = vmul.f32 %v413, %v410
  %v418 = vadd.f32 %v404, %v416
  %v419 = vadd.f32 %v405, %v417
  %s420 = scalar_lea.vmem %s0, 53
  %v421 = vld [vmem:[%s420] ss:$8 sm:$0x3]
  %s422 = scalar_lea.vmem %s1, 464
  %v423 = vld [vmem:[%s422] sm:$0xff]
  %v424 = vld [vmem:[%s422 + $0x8] sm:$0xff]
  %v426 = vperm.slane %v421, 0
  %v427 = vperm.slane %v421, 1
  %v430 = vmul.f32 %v426, %v423
  %v431 = vmul.f32 %v427, %v424
  %v432 = vadd.f32 %v418, %v430
  %v433 = vadd.f32 %v419, %v431
  %s434 = scalar_lea.vmem %s0, 54
  %v435 = vld [vmem:[%s434] ss:$8 sm:$0x3]
  %s436 = scalar_lea.vmem %s1, 480
  %v437 = vld [vmem:[%s436] sm:$0xff]
  %v438 = vld [vmem:[%s436 + $0x8] sm:$0xff]
  %v440 = vperm.slane %v435, 0
  %v441 = vperm.slane %v435, 1
  %v444 = vmul.f32 %v440, %v437
  %v445 = vmul.f32 %v441, %v438
  %v446 = vadd.f32 %v432, %v444
  %v447 = vadd.f32 %v433, %v445
  %s448 = scalar_lea.vmem %s0, 55
  %v449 = vld [vmem:[%s448] ss:$8 sm:$0x3]
  %s450 = scalar_lea.vmem %s1, 496
  %v451 = vld [vmem:[%s450] sm:$0xff]
  %v452 = vld [vmem:[%s450 + $0x8] sm:$0xff]
  %v454 = vperm.slane %v449, 0
  %v455 = vperm.slane %v449, 1
  %v458 = vmul.f32 %v454, %v451
  %v459 = vmul.f32 %v455, %v452
  %v460 = vadd.f32 %v446, %v458
  %v461 = vadd.f32 %v447, %v459
  %s462 = scalar_lea.vmem %s0, 64
  %v463 = vld [vmem:[%s462] ss:$8 sm:$0x3]
  %s464 = scalar_lea.vmem %s1, 512
  %v465 = vld [vmem:[%s464] sm:$0xff]
  %v466 = vld [vmem:[%s464 + $0x8] sm:$0xff]
  %v468 = vperm.slane %v463, 0
  %v469 = vperm.slane %v463, 1
  %v472 = vmul.f32 %v468, %v465
  %v473 = vmul.f32 %v469, %v466
  %v474 = vadd.f32 %v460, %v472
  %v475 = vadd.f32 %v461, %v473
  %s476 = scalar_lea.vmem %s0, 65
  %v477 = vld [vmem:[%s476] ss:$8 sm:$0x3]
  %s478 = scalar_lea.vmem %s1, 528
  %v479 = vld [vmem:[%s478] sm:$0xff]
  %v480 = vld [vmem:[%s478 + $0x8] sm:$0xff]
  %v482 = vperm.slane %v477, 0
  %v483 = vperm.slane %v477, 1
  %v486 = vmul.f32 %v482, %v479
  %v487 = vmul.f32 %v483, %v480
  %v488 = vadd.f32 %v474, %v486
  %v489 = vadd.f32 %v475, %v487
  %s490 = scalar_lea.vmem %s0, 66
  %v491 = vld [vmem:[%s490] ss:$8 sm:$0x3]
  %s492 = scalar_lea.vmem %s1, 544
  %v493 = vld [vmem:[%s492] sm:$0xff]
  %v494 = vld [vmem:[%s492 + $0x8] sm:$0xff]
  %v496 = vperm.slane %v491, 0
  %v497 = vperm.slane %v491, 1
  %v500 = vmul.f32 %v496, %v493
  %v501 = vmul.f32 %v497, %v494
  %v502 = vadd.f32 %v488, %v500
  %v503 = vadd.f32 %v489, %v501
  %s504 = scalar_lea.vmem %s0, 67
  %v505 = vld [vmem:[%s504] ss:$8 sm:$0x3]
  %s506 = scalar_lea.vmem %s1, 560
  %v507 = vld [vmem:[%s506] sm:$0xff]
  %v508 = vld [vmem:[%s506 + $0x8] sm:$0xff]
  %v510 = vperm.slane %v505, 0
  %v511 = vperm.slane %v505, 1
  %v514 = vmul.f32 %v510, %v507
  %v515 = vmul.f32 %v511, %v508
  %v516 = vadd.f32 %v502, %v514
  %v517 = vadd.f32 %v503, %v515
  %518 = vst [vmem:[%s3] sm:$0xff] %v516
  %519 = vst [vmem:[%s3 + $0x8] sm:$0xff] %v517
  %v520 = vld [vmem:[%s2] sm:$0xff]
  %v521 = vld [vmem:[%s2 + $0x8] sm:$0xff]
  %s522 = scalar_lea.vmem %s0, 80
  %v523 = vld [vmem:[%s522] ss:$8 sm:$0x3]
  %v524 = vld [vmem:[%s1] sm:$0xff]
  %v525 = vld [vmem:[%s1 + $0x8] sm:$0xff]
  %v527 = vperm.slane %v523, 0
  %v528 = vperm.slane %v523, 1
  %v531 = vmul.f32 %v527, %v524
  %v532 = vmul.f32 %v528, %v525
  %v533 = vadd.f32 %v520, %v531
  %v534 = vadd.f32 %v521, %v532
  %s535 = scalar_lea.vmem %s522, 1
  %v536 = vld [vmem:[%s535] ss:$8 sm:$0x3]
  %v537 = vld [vmem:[%s30] sm:$0xff]
  %v538 = vld [vmem:[%s30 + $0x8] sm:$0xff]
  %v540 = vperm.slane %v536, 0
  %v541 = vperm.slane %v536, 1
  %v544 = vmul.f32 %v540, %v537
  %v545 = vmul.f32 %v541, %v538
  %v546 = vadd.f32 %v533, %v544
  %v547 = vadd.f32 %v534, %v545
  %s548 = scalar_lea.vmem %s522, 2
  %v549 = vld [vmem:[%s548] ss:$8 sm:$0x3]
  %v550 = vld [vmem:[%s44] sm:$0xff]
  %v551 = vld [vmem:[%s44 + $0x8] sm:$0xff]
  %v553 = vperm.slane %v549, 0
  %v554 = vperm.slane %v549, 1
  %v557 = vmul.f32 %v553, %v550
  %v558 = vmul.f32 %v554, %v551
  %v559 = vadd.f32 %v546, %v557
  %v560 = vadd.f32 %v547, %v558
  %s561 = scalar_lea.vmem %s522, 3
  %v562 = vld [vmem:[%s561] ss:$8 sm:$0x3]
  %v563 = vld [vmem:[%s58] sm:$0xff]
  %v564 = vld [vmem:[%s58 + $0x8] sm:$0xff]
  %v566 = vperm.slane %v562, 0
  %v567 = vperm.slane %v562, 1
  %v570 = vmul.f32 %v566, %v563
  %v571 = vmul.f32 %v567, %v564
  %v572 = vadd.f32 %v559, %v570
  %v573 = vadd.f32 %v560, %v571
  %s574 = scalar_lea.vmem %s522, 4
  %v575 = vld [vmem:[%s574] ss:$8 sm:$0x3]
  %v576 = vld [vmem:[%s72] sm:$0xff]
  %v577 = vld [vmem:[%s72 + $0x8] sm:$0xff]
  %v579 = vperm.slane %v575, 0
  %v580 = vperm.slane %v575, 1
  %v583 = vmul.f32 %v579, %v576
  %v584 = vmul.f32 %v580, %v577
  %v585 = vadd.f32 %v572, %v583
  %v586 = vadd.f32 %v573, %v584
  %s587 = scalar_lea.vmem %s522, 5
  %v588 = vld [vmem:[%s587] ss:$8 sm:$0x3]
  %v589 = vld [vmem:[%s86] sm:$0xff]
  %v590 = vld [vmem:[%s86 + $0x8] sm:$0xff]
  %v592 = vperm.slane %v588, 0
  %v593 = vperm.slane %v588, 1
  %v596 = vmul.f32 %v592, %v589
  %v597 = vmul.f32 %v593, %v590
  %v598 = vadd.f32 %v585, %v596
  %v599 = vadd.f32 %v586, %v597
  %s600 = scalar_lea.vmem %s522, 6
  %v601 = vld [vmem:[%s600] ss:$8 sm:$0x3]
  %v602 = vld [vmem:[%s100] sm:$0xff]
  %v603 = vld [vmem:[%s100 + $0x8] sm:$0xff]
  %v605 = vperm.slane %v601, 0
  %v606 = vperm.slane %v601, 1
  %v609 = vmul.f32 %v605, %v602
  %v610 = vmul.f32 %v606, %v603
  %v611 = vadd.f32 %v598, %v609
  %v612 = vadd.f32 %v599, %v610
  %s613 = scalar_lea.vmem %s522, 7
  %v614 = vld [vmem:[%s613] ss:$8 sm:$0x3]
  %v615 = vld [vmem:[%s114] sm:$0xff]
  %v616 = vld [vmem:[%s114 + $0x8] sm:$0xff]
  %v618 = vperm.slane %v614, 0
  %v619 = vperm.slane %v614, 1
  %v622 = vmul.f32 %v618, %v615
  %v623 = vmul.f32 %v619, %v616
  %v624 = vadd.f32 %v611, %v622
  %v625 = vadd.f32 %v612, %v623
  %s626 = scalar_lea.vmem %s522, 16
  %v627 = vld [vmem:[%s626] ss:$8 sm:$0x3]
  %v628 = vld [vmem:[%s128] sm:$0xff]
  %v629 = vld [vmem:[%s128 + $0x8] sm:$0xff]
  %v631 = vperm.slane %v627, 0
  %v632 = vperm.slane %v627, 1
  %v635 = vmul.f32 %v631, %v628
  %v636 = vmul.f32 %v632, %v629
  %v637 = vadd.f32 %v624, %v635
  %v638 = vadd.f32 %v625, %v636
  %s639 = scalar_lea.vmem %s522, 17
  %v640 = vld [vmem:[%s639] ss:$8 sm:$0x3]
  %v641 = vld [vmem:[%s142] sm:$0xff]
  %v642 = vld [vmem:[%s142 + $0x8] sm:$0xff]
  %v644 = vperm.slane %v640, 0
  %v645 = vperm.slane %v640, 1
  %v648 = vmul.f32 %v644, %v641
  %v649 = vmul.f32 %v645, %v642
  %v650 = vadd.f32 %v637, %v648
  %v651 = vadd.f32 %v638, %v649
  %s652 = scalar_lea.vmem %s522, 18
  %v653 = vld [vmem:[%s652] ss:$8 sm:$0x3]
  %v654 = vld [vmem:[%s156] sm:$0xff]
  %v655 = vld [vmem:[%s156 + $0x8] sm:$0xff]
  %v657 = vperm.slane %v653, 0
  %v658 = vperm.slane %v653, 1
  %v661 = vmul.f32 %v657, %v654
  %v662 = vmul.f32 %v658, %v655
  %v663 = vadd.f32 %v650, %v661
  %v664 = vadd.f32 %v651, %v662
  %s665 = scalar_lea.vmem %s522, 19
  %v666 = vld [vmem:[%s665] ss:$8 sm:$0x3]
  %v667 = vld [vmem:[%s170] sm:$0xff]
  %v668 = vld [vmem:[%s170 + $0x8] sm:$0xff]
  %v670 = vperm.slane %v666, 0
  %v671 = vperm.slane %v666, 1
  %v674 = vmul.f32 %v670, %v667
  %v675 = vmul.f32 %v671, %v668
  %v676 = vadd.f32 %v663, %v674
  %v677 = vadd.f32 %v664, %v675
  %s678 = scalar_lea.vmem %s522, 20
  %v679 = vld [vmem:[%s678] ss:$8 sm:$0x3]
  %v680 = vld [vmem:[%s184] sm:$0xff]
  %v681 = vld [vmem:[%s184 + $0x8] sm:$0xff]
  %v683 = vperm.slane %v679, 0
  %v684 = vperm.slane %v679, 1
  %v687 = vmul.f32 %v683, %v680
  %v688 = vmul.f32 %v684, %v681
  %v689 = vadd.f32 %v676, %v687
  %v690 = vadd.f32 %v677, %v688
  %s691 = scalar_lea.vmem %s522, 21
  %v692 = vld [vmem:[%s691] ss:$8 sm:$0x3]
  %v693 = vld [vmem:[%s198] sm:$0xff]
  %v694 = vld [vmem:[%s198 + $0x8] sm:$0xff]
  %v696 = vperm.slane %v692, 0
  %v697 = vperm.slane %v692, 1
  %v700 = vmul.f32 %v696, %v693
  %v701 = vmul.f32 %v697, %v694
  %v702 = vadd.f32 %v689, %v700
  %v703 = vadd.f32 %v690, %v701
  %s704 = scalar_lea.vmem %s522, 22
  %v705 = vld [vmem:[%s704] ss:$8 sm:$0x3]
  %v706 = vld [vmem:[%s212] sm:$0xff]
  %v707 = vld [vmem:[%s212 + $0x8] sm:$0xff]
  %v709 = vperm.slane %v705, 0
  %v710 = vperm.slane %v705, 1
  %v713 = vmul.f32 %v709, %v706
  %v714 = vmul.f32 %v710, %v707
  %v715 = vadd.f32 %v702, %v713
  %v716 = vadd.f32 %v703, %v714
  %s717 = scalar_lea.vmem %s522, 23
  %v718 = vld [vmem:[%s717] ss:$8 sm:$0x3]
  %v719 = vld [vmem:[%s226] sm:$0xff]
  %v720 = vld [vmem:[%s226 + $0x8] sm:$0xff]
  %v722 = vperm.slane %v718, 0
  %v723 = vperm.slane %v718, 1
  %v726 = vmul.f32 %v722, %v719
  %v727 = vmul.f32 %v723, %v720
  %v728 = vadd.f32 %v715, %v726
  %v729 = vadd.f32 %v716, %v727
  %s730 = scalar_lea.vmem %s522, 32
  %v731 = vld [vmem:[%s730] ss:$8 sm:$0x3]
  %v732 = vld [vmem:[%s240] sm:$0xff]
  %v733 = vld [vmem:[%s240 + $0x8] sm:$0xff]
  %v735 = vperm.slane %v731, 0
  %v736 = vperm.slane %v731, 1
  %v739 = vmul.f32 %v735, %v732
  %v740 = vmul.f32 %v736, %v733
  %v741 = vadd.f32 %v728, %v739
  %v742 = vadd.f32 %v729, %v740
  %s743 = scalar_lea.vmem %s522, 33
  %v744 = vld [vmem:[%s743] ss:$8 sm:$0x3]
  %v745 = vld [vmem:[%s254] sm:$0xff]
  %v746 = vld [vmem:[%s254 + $0x8] sm:$0xff]
  %v748 = vperm.slane %v744, 0
  %v749 = vperm.slane %v744, 1
  %v752 = vmul.f32 %v748, %v745
  %v753 = vmul.f32 %v749, %v746
  %v754 = vadd.f32 %v741, %v752
  %v755 = vadd.f32 %v742, %v753
  %s756 = scalar_lea.vmem %s522, 34
  %v757 = vld [vmem:[%s756] ss:$8 sm:$0x3]
  %v758 = vld [vmem:[%s268] sm:$0xff]
  %v759 = vld [vmem:[%s268 + $0x8] sm:$0xff]
  %v761 = vperm.slane %v757, 0
  %v762 = vperm.slane %v757, 1
  %v765 = vmul.f32 %v761, %v758
  %v766 = vmul.f32 %v762, %v759
  %v767 = vadd.f32 %v754, %v765
  %v768 = vadd.f32 %v755, %v766
  %s769 = scalar_lea.vmem %s522, 35
  %v770 = vld [vmem:[%s769] ss:$8 sm:$0x3]
  %v771 = vld [vmem:[%s282] sm:$0xff]
  %v772 = vld [vmem:[%s282 + $0x8] sm:$0xff]
  %v774 = vperm.slane %v770, 0
  %v775 = vperm.slane %v770, 1
  %v778 = vmul.f32 %v774, %v771
  %v779 = vmul.f32 %v775, %v772
  %v780 = vadd.f32 %v767, %v778
  %v781 = vadd.f32 %v768, %v779
  %s782 = scalar_lea.vmem %s522, 36
  %v783 = vld [vmem:[%s782] ss:$8 sm:$0x3]
  %v784 = vld [vmem:[%s296] sm:$0xff]
  %v785 = vld [vmem:[%s296 + $0x8] sm:$0xff]
  %v787 = vperm.slane %v783, 0
  %v788 = vperm.slane %v783, 1
  %v791 = vmul.f32 %v787, %v784
  %v792 = vmul.f32 %v788, %v785
  %v793 = vadd.f32 %v780, %v791
  %v794 = vadd.f32 %v781, %v792
  %s795 = scalar_lea.vmem %s522, 37
  %v796 = vld [vmem:[%s795] ss:$8 sm:$0x3]
  %v797 = vld [vmem:[%s310] sm:$0xff]
  %v798 = vld [vmem:[%s310 + $0x8] sm:$0xff]
  %v800 = vperm.slane %v796, 0
  %v801 = vperm.slane %v796, 1
  %v804 = vmul.f32 %v800, %v797
  %v805 = vmul.f32 %v801, %v798
  %v806 = vadd.f32 %v793, %v804
  %v807 = vadd.f32 %v794, %v805
  %s808 = scalar_lea.vmem %s522, 38
  %v809 = vld [vmem:[%s808] ss:$8 sm:$0x3]
  %v810 = vld [vmem:[%s324] sm:$0xff]
  %v811 = vld [vmem:[%s324 + $0x8] sm:$0xff]
  %v813 = vperm.slane %v809, 0
  %v814 = vperm.slane %v809, 1
  %v817 = vmul.f32 %v813, %v810
  %v818 = vmul.f32 %v814, %v811
  %v819 = vadd.f32 %v806, %v817
  %v820 = vadd.f32 %v807, %v818
  %s821 = scalar_lea.vmem %s522, 39
  %v822 = vld [vmem:[%s821] ss:$8 sm:$0x3]
  %v823 = vld [vmem:[%s338] sm:$0xff]
  %v824 = vld [vmem:[%s338 + $0x8] sm:$0xff]
  %v826 = vperm.slane %v822, 0
  %v827 = vperm.slane %v822, 1
  %v830 = vmul.f32 %v826, %v823
  %v831 = vmul.f32 %v827, %v824
  %v832 = vadd.f32 %v819, %v830
  %v833 = vadd.f32 %v820, %v831
  %s834 = scalar_lea.vmem %s522, 48
  %v835 = vld [vmem:[%s834] ss:$8 sm:$0x3]
  %v836 = vld [vmem:[%s352] sm:$0xff]
  %v837 = vld [vmem:[%s352 + $0x8] sm:$0xff]
  %v839 = vperm.slane %v835, 0
  %v840 = vperm.slane %v835, 1
  %v843 = vmul.f32 %v839, %v836
  %v844 = vmul.f32 %v840, %v837
  %v845 = vadd.f32 %v832, %v843
  %v846 = vadd.f32 %v833, %v844
  %s847 = scalar_lea.vmem %s522, 49
  %v848 = vld [vmem:[%s847] ss:$8 sm:$0x3]
  %v849 = vld [vmem:[%s366] sm:$0xff]
  %v850 = vld [vmem:[%s366 + $0x8] sm:$0xff]
  %v852 = vperm.slane %v848, 0
  %v853 = vperm.slane %v848, 1
  %v856 = vmul.f32 %v852, %v849
  %v857 = vmul.f32 %v853, %v850
  %v858 = vadd.f32 %v845, %v856
  %v859 = vadd.f32 %v846, %v857
  %s860 = scalar_lea.vmem %s522, 50
  %v861 = vld [vmem:[%s860] ss:$8 sm:$0x3]
  %v862 = vld [vmem:[%s380] sm:$0xff]
  %v863 = vld [vmem:[%s380 + $0x8] sm:$0xff]
  %v865 = vperm.slane %v861, 0
  %v866 = vperm.slane %v861, 1
  %v869 = vmul.f32 %v865, %v862
  %v870 = vmul.f32 %v866, %v863
  %v871 = vadd.f32 %v858, %v869
  %v872 = vadd.f32 %v859, %v870
  %s873 = scalar_lea.vmem %s522, 51
  %v874 = vld [vmem:[%s873] ss:$8 sm:$0x3]
  %v875 = vld [vmem:[%s394] sm:$0xff]
  %v876 = vld [vmem:[%s394 + $0x8] sm:$0xff]
  %v878 = vperm.slane %v874, 0
  %v879 = vperm.slane %v874, 1
  %v882 = vmul.f32 %v878, %v875
  %v883 = vmul.f32 %v879, %v876
  %v884 = vadd.f32 %v871, %v882
  %v885 = vadd.f32 %v872, %v883
  %s886 = scalar_lea.vmem %s522, 52
  %v887 = vld [vmem:[%s886] ss:$8 sm:$0x3]
  %v888 = vld [vmem:[%s408] sm:$0xff]
  %v889 = vld [vmem:[%s408 + $0x8] sm:$0xff]
  %v891 = vperm.slane %v887, 0
  %v892 = vperm.slane %v887, 1
  %v895 = vmul.f32 %v891, %v888
  %v896 = vmul.f32 %v892, %v889
  %v897 = vadd.f32 %v884, %v895
  %v898 = vadd.f32 %v885, %v896
  %s899 = scalar_lea.vmem %s522, 53
  %v900 = vld [vmem:[%s899] ss:$8 sm:$0x3]
  %v901 = vld [vmem:[%s422] sm:$0xff]
  %v902 = vld [vmem:[%s422 + $0x8] sm:$0xff]
  %v904 = vperm.slane %v900, 0
  %v905 = vperm.slane %v900, 1
  %v908 = vmul.f32 %v904, %v901
  %v909 = vmul.f32 %v905, %v902
  %v910 = vadd.f32 %v897, %v908
  %v911 = vadd.f32 %v898, %v909
  %s912 = scalar_lea.vmem %s522, 54
  %v913 = vld [vmem:[%s912] ss:$8 sm:$0x3]
  %v914 = vld [vmem:[%s436] sm:$0xff]
  %v915 = vld [vmem:[%s436 + $0x8] sm:$0xff]
  %v917 = vperm.slane %v913, 0
  %v918 = vperm.slane %v913, 1
  %v921 = vmul.f32 %v917, %v914
  %v922 = vmul.f32 %v918, %v915
  %v923 = vadd.f32 %v910, %v921
  %v924 = vadd.f32 %v911, %v922
  %s925 = scalar_lea.vmem %s522, 55
  %v926 = vld [vmem:[%s925] ss:$8 sm:$0x3]
  %v927 = vld [vmem:[%s450] sm:$0xff]
  %v928 = vld [vmem:[%s450 + $0x8] sm:$0xff]
  %v930 = vperm.slane %v926, 0
  %v931 = vperm.slane %v926, 1
  %v934 = vmul.f32 %v930, %v927
  %v935 = vmul.f32 %v931, %v928
  %v936 = vadd.f32 %v923, %v934
  %v937 = vadd.f32 %v924, %v935
  %s938 = scalar_lea.vmem %s522, 64
  %v939 = vld [vmem:[%s938] ss:$8 sm:$0x3]
  %v940 = vld [vmem:[%s464] sm:$0xff]
  %v941 = vld [vmem:[%s464 + $0x8] sm:$0xff]
  %v943 = vperm.slane %v939, 0
  %v944 = vperm.slane %v939, 1
  %v947 = vmul.f32 %v943, %v940
  %v948 = vmul.f32 %v944, %v941
  %v949 = vadd.f32 %v936, %v947
  %v950 = vadd.f32 %v937, %v948
  %s951 = scalar_lea.vmem %s522, 65
  %v952 = vld [vmem:[%s951] ss:$8 sm:$0x3]
  %v953 = vld [vmem:[%s478] sm:$0xff]
  %v954 = vld [vmem:[%s478 + $0x8] sm:$0xff]
  %v956 = vperm.slane %v952, 0
  %v957 = vperm.slane %v952, 1
  %v960 = vmul.f32 %v956, %v953
  %v961 = vmul.f32 %v957, %v954
  %v962 = vadd.f32 %v949, %v960
  %v963 = vadd.f32 %v950, %v961
  %s964 = scalar_lea.vmem %s522, 66
  %v965 = vld [vmem:[%s964] ss:$8 sm:$0x3]
  %v966 = vld [vmem:[%s492] sm:$0xff]
  %v967 = vld [vmem:[%s492 + $0x8] sm:$0xff]
  %v969 = vperm.slane %v965, 0
  %v970 = vperm.slane %v965, 1
  %v973 = vmul.f32 %v969, %v966
  %v974 = vmul.f32 %v970, %v967
  %v975 = vadd.f32 %v962, %v973
  %v976 = vadd.f32 %v963, %v974
  %s977 = scalar_lea.vmem %s522, 67
  %v978 = vld [vmem:[%s977] ss:$8 sm:$0x3]
  %v979 = vld [vmem:[%s506] sm:$0xff]
  %v980 = vld [vmem:[%s506 + $0x8] sm:$0xff]
  %v982 = vperm.slane %v978, 0
  %v983 = vperm.slane %v978, 1
  %v986 = vmul.f32 %v982, %v979
  %v987 = vmul.f32 %v983, %v980
  %v988 = vadd.f32 %v975, %v986
  %v989 = vadd.f32 %v976, %v987
  %s990 = scalar_lea.vmem %s3, 16
  %991 = vst [vmem:[%s990] sm:$0xff] %v988
  %992 = vst [vmem:[%s990 + $0x8] sm:$0xff] %v989
  // Predicated region
  $region14: #{local_linear_forward.1} parent=0 // pred_check
    _
  $region15: #{local_linear_forward.1} parent=0 // pred_check_branch
    %994 = sbr.rel (0) target = $region17
  $region16: #{local_linear_forward.1} parent=0 // pred_region
    _
  $region17: #{local_linear_forward.1} parent=0 // pred_fallthru
    _
  // Predicated region
  $region18: #{local_linear_forward.1} parent=0 // pred_check
    _
  $region19: #{local_linear_forward.1} parent=0 // pred_check_branch
    %996 = sbr.rel (0) target = $region21
  $region20: #{local_linear_forward.1} parent=0 // pred_region
    _
  $region21: #{local_linear_forward.1} parent=0 // pred_fallthru
    _

</llo_original>
